<compile_context>
chip_gen: v7x
topology: tpu7x:2x2x1
jax: 0.10.0
libtpu: 0.0.40
codegen_flags: <defaults>
</compile_context>

<pallas_src>
import jax
import jax.numpy as jnp
import numpy as np
from jax import lax
from jax.experimental import pallas as pl
from jax.experimental.pallas import tpu as pltpu

EPS = 1e-5


def _vmem_cap_bytes():
    """Per-core VMEM capacity (v5e/v6e 128 MiB, v7x 64 MiB); safe fallback."""
    try:
        cap = getattr(pltpu.get_tpu_info(), "vmem_capacity_bytes", None)
        if cap:
            return int(cap)
    except Exception:
        pass
    return 64 << 20


# ---------------------------------------------------------------------------
# In-kernel helper: SpatialGate tail (depthwise 3x3 -> pointwise 1x1 -> IBN ->
# 1x1 conv -> sigmoid) on one pooled 2-channel plane.  Returns the gate plane.
# ---------------------------------------------------------------------------
def _gate_scale(p_ref, pmax, pmean, pad_ref, swap_taps):
    p0, p1 = pmax.shape

    # Padded scratch for the 3x3 "same" conv.  The whole buffer is re-zeroed
    # each step: it is O(plane) work (negligible vs the O(C*H*W) slab I/O) and
    # keeps the kernel correct when the "parallel" batch axis is partitioned
    # across TensorCores (a program_id==0 one-time init would not run on every
    # core's private scratch).
    pad_ref[...] = jnp.zeros_like(pad_ref)
    pad_ref[0, 1:p0 + 1, 1:p1 + 1] = pmax
    pad_ref[1, 1:p0 + 1, 1:p1 + 1] = pmean

    # Depthwise 3x3 conv, groups=2, padding=1.  When the plane is stored
    # transposed w.r.t. the PyTorch view (W-pooled branch), the 3x3 taps are
    # transposed instead of transposing the data.
    dw0 = jnp.zeros((p0, p1), jnp.float32)
    dw1 = jnp.zeros((p0, p1), jnp.float32)
    for di in range(3):
        for dj in range(3):
            k = (dj * 3 + di) if swap_taps else (di * 3 + dj)
            dw0 = dw0 + p_ref[k] * pad_ref[0, di:di + p0, dj:dj + p1]
            dw1 = dw1 + p_ref[9 + k] * pad_ref[1, di:di + p0, dj:dj + p1]
    dw0 = dw0 + p_ref[18]
    dw1 = dw1 + p_ref[19]

    # Pointwise 1x1 conv (2 -> 2).
    q0 = p_ref[20] * dw0 + p_ref[21] * dw1 + p_ref[24]
    q1 = p_ref[22] * dw0 + p_ref[23] * dw1 + p_ref[25]

    # IBN: ch0 InstanceNorm (per-sample plane stats), ch1 BatchNorm (eval).
    inv_n = 1.0 / float(p0 * p1)
    mu = jnp.sum(jnp.sum(q0, axis=1, keepdims=True), axis=0, keepdims=True) * inv_n
    d = q0 - mu
    var = jnp.sum(jnp.sum(d * d, axis=1, keepdims=True), axis=0, keepdims=True) * inv_n
    c0 = d * (lax.rsqrt(var + EPS) * p_ref[26]) + p_ref[27]
    bn_scale = p_ref[30] / jnp.sqrt(p_ref[29] + EPS)          # scalar, once
    c1 = (q1 - p_ref[28]) * bn_scale + p_ref[31]

    # Spatial 1x1 conv (2 -> 1, no bias) + sigmoid gate.
    return jax.nn.sigmoid(p_ref[32] * c0 + p_ref[33] * c1)


# ---------------------------------------------------------------------------
# Fused kernel: one batch element per grid step, all three gates at once.
# ---------------------------------------------------------------------------
def _triplet_kernel(ps_ref, ph_ref, pw_ref, x_ref,
                    os_ref, oh_ref, ow_ref,
                    pad_s, pad_h, pad_w):
    x = x_ref[0]                                   # (C, H, W)
    c, h, w = x.shape

    # ChannelPool for the three views — vectorized reductions (no unrolling).
    s_max = jnp.max(x, axis=0)
    s_mean = jnp.sum(x, axis=0) * (1.0 / c)        # (H, W)  pool over C
    h_max = jnp.max(x, axis=1)
    h_mean = jnp.sum(x, axis=1) * (1.0 / h)        # (C, W)  pool over H
    w_max = jnp.max(x, axis=2)
    w_mean = jnp.sum(x, axis=2) * (1.0 / w)        # (C, H)  pool over W

    scale_s = _gate_scale(ps_ref, s_max, s_mean, pad_s, swap_taps=False)
    scale_h = _gate_scale(ph_ref, h_max, h_mean, pad_h, swap_taps=False)
    # W-pooled view's spatial plane is (H, C); kept as (C, H) with transposed taps.
    scale_w = _gate_scale(pw_ref, w_max, w_mean, pad_w, swap_taps=True)

    # Gate + write each output from a fresh VMEM read of x (short live range:
    # no vreg spilling of the full slab at large C*H*W; VMEM vld bandwidth is
    # far above the HBM roofline so the re-reads are hidden by the pipeline).
    # All three outputs stay lane-dense NCHW.
    os_ref[0] = x_ref[0] * scale_s[None, :, :]
    oh_ref[0] = x_ref[0] * scale_h[:, None, :]
    ow_ref[0] = x_ref[0] * scale_w[:, :, None]


def triplet_attention(x, params_h, params_w, params_s):
    """x: (B, C, H, W) f32.  Returns (x_out, x_out11, x_out21)."""
    b, c, h, w = x.shape

    out_sds = jax.ShapeDtypeStruct((b, c, h, w), jnp.float32)
    blk = pl.BlockSpec((1, c, h, w), lambda i: (i, 0, 0, 0))
    smem = pl.BlockSpec(memory_space=pltpu.MemorySpace.SMEM)

    slab_bytes = c * h * w * 4
    scratch_bytes = 4 * 2 * ((h + 2) * (w + 2) + (c + 2) * (w + 2) + (c + 2) * (h + 2))
    # 1 input + 3 outputs, double-buffered, plus scratch and compiler temporaries.
    want = 12 * slab_bytes + scratch_bytes + (4 << 20)
    vmem_limit = int(min(max(want, 32 << 20), _vmem_cap_bytes()))

    # TODO(synk): for very large C*H*W slabs that exceed VMEM, add a channel-tiled
    # two-pass variant (reduction pass for the pooled planes, tiled apply pass).
    return pl.pallas_call(
        _triplet_kernel,
        out_shape=(out_sds, out_sds, out_sds),
        grid_spec=pltpu.PrefetchScalarGridSpec(
            num_scalar_prefetch=0,
            grid=(b,),
            in_specs=[smem, smem, smem, blk],
            out_specs=(blk, blk, blk),
            scratch_shapes=[
                pltpu.VMEM((2, h + 2, w + 2), jnp.float32),  # pool-over-C plane (H, W)
                pltpu.VMEM((2, c + 2, w + 2), jnp.float32),  # pool-over-H plane (C, W)
                pltpu.VMEM((2, c + 2, h + 2), jnp.float32),  # pool-over-W plane (C, H)
            ],
        ),
        compiler_params=pltpu.CompilerParams(
            dimension_semantics=("parallel",),
            vmem_limit_bytes=vmem_limit,
        ),
    )(params_s, params_h, params_w, x)


# ---------------------------------------------------------------------------
# Deterministic parameter initialization (PyTorch-like fan-in uniform bounds)
# ---------------------------------------------------------------------------
def init_gate_params(key):
    ks = jax.random.split(key, 5)
    bound = 1.0 / np.sqrt(9.0)
    dw_w = jax.random.uniform(ks[0], (2, 3, 3), minval=-bound, maxval=bound)
    dw_b = jax.random.uniform(ks[1], (2,), minval=-bound, maxval=bound)
    bound = 1.0 / np.sqrt(2.0)
    pw_w = jax.random.uniform(ks[2], (2, 2), minval=-bound, maxval=bound)
    pw_b = jax.random.uniform(ks[3], (2,), minval=-bound, maxval=bound)
    in_gamma = jnp.ones((1,));  in_beta = jnp.zeros((1,))
    bn_mean = jnp.zeros((1,));  bn_var = jnp.ones((1,))
    bn_gamma = jnp.ones((1,));  bn_beta = jnp.zeros((1,))
    bound = 1.0 / np.sqrt(2.0)
    s_w = jax.random.uniform(ks[4], (2,), minval=-bound, maxval=bound)
    return jnp.concatenate([
        dw_w.reshape(-1), dw_b, pw_w.reshape(-1), pw_b,
        in_gamma, in_beta, bn_mean, bn_var, bn_gamma, bn_beta, s_w,
    ]).astype(jnp.float32)                              # (34,)


# ---------------------------------------------------------------------------
# Pure-JAX reference (independent: uses explicit permutes, like PyTorch)
# ---------------------------------------------------------------------------
def spatial_gate_ref(x, params):
    dw_w = params[:18].reshape(2, 3, 3)
    dw_b = params[18:20]
    pw_w = params[20:24].reshape(2, 2)
    pw_b = params[24:26]
    in_g, in_b = params[26], params[27]
    bn_m, bn_v, bn_g, bn_b = params[28], params[29], params[30], params[31]
    s_w = params[32:34]

    B, _, H, W = x.shape
    pooled = jnp.stack([jnp.max(x, axis=1), jnp.mean(x, axis=1)], axis=1)
    padded = jnp.pad(pooled, ((0, 0), (0, 0), (1, 1), (1, 1)))
    dw = jnp.zeros((B, 2, H, W), jnp.float32)
    for di in range(3):
        for dj in range(3):
            dw = dw + dw_w[None, :, di, dj, None, None] * padded[:, :, di:di + H, dj:dj + W]
    dw = dw + dw_b[None, :, None, None]
    p = jnp.einsum('oi,bihw->bohw', pw_w, dw) + pw_b[None, :, None, None]
    p0, p1 = p[:, 0], p[:, 1]
    mu = jnp.mean(p0, axis=(1, 2), keepdims=True)
    var = jnp.mean((p0 - mu) ** 2, axis=(1, 2), keepdims=True)
    c0 = (p0 - mu) / jnp.sqrt(var + EPS) * in_g + in_b
    c1 = (p1 - bn_m) / jnp.sqrt(bn_v + EPS) * bn_g + bn_b
    scale = jax.nn.sigmoid(s_w[0] * c0 + s_w[1] * c1)[:, None]
    return x * scale


def triplet_attention_ref(x, params_h, params_w, params_s):
    x_out11 = jnp.transpose(
        spatial_gate_ref(jnp.transpose(x, (0, 2, 1, 3)), params_h), (0, 2, 1, 3))
    x_out21 = jnp.transpose(
        spatial_gate_ref(jnp.transpose(x, (0, 3, 2, 1)), params_w), (0, 3, 2, 1))
    x_out = spatial_gate_ref(x, params_s)
    return x_out, x_out11, x_out21


if __name__ == "__main__":
    key = jax.random.PRNGKey(0)
    k_x, k_h, k_w, k_s = jax.random.split(key, 4)

    B, C, H, W = 2, 4, 16, 16
    x = jax.random.normal(k_x, (B, C, H, W), dtype=jnp.float32)
    params_h = init_gate_params(k_h)
    params_w = init_gate_params(k_w)
    params_s = init_gate_params(k_s)

    outs = triplet_attention(x, params_h, params_w, params_s)
    outs = jax.block_until_ready(outs)

    refs = triplet_attention_ref(x, params_h, params_w, params_s)
    for o, r in zip(outs, refs):
        np.testing.assert_allclose(np.asarray(o), np.asarray(r),
                                   rtol=1e-4, atol=1e-5)

    print("KERNEL_OK")
</pallas_src>

<mosaic_0001>
module attributes {stable_mosaic.version = 11 : i64} {
  func.func @_triplet_kernel(%arg0: i32, %arg1: memref<34xf32, #tpu.memory_space<smem>>, %arg2: memref<34xf32, #tpu.memory_space<smem>>, %arg3: memref<34xf32, #tpu.memory_space<smem>>, %arg4: memref<1x4x16x16xf32, #tpu.memory_space<vmem>>, %arg5: memref<1x4x16x16xf32, #tpu.memory_space<vmem>>, %arg6: memref<1x4x16x16xf32, #tpu.memory_space<vmem>>, %arg7: memref<1x4x16x16xf32, #tpu.memory_space<vmem>>, %arg8: memref<2x18x18xf32, #tpu.memory_space<vmem>>, %arg9: memref<2x6x18xf32, #tpu.memory_space<vmem>>, %arg10: memref<2x6x18xf32, #tpu.memory_space<vmem>>) attributes {dimension_semantics = [#tpu.dimension_semantics<parallel>], iteration_bounds = array<i64: 2>, scalar_prefetch = 0 : i64, scratch_operands = 3 : i64, tpu.core_type = #tpu.core_type<tc>, window_params = [{transform_indices = @transform_0, window_bounds = array<i64: 34>}, {transform_indices = @transform_1, window_bounds = array<i64: 34>}, {transform_indices = @transform_2, window_bounds = array<i64: 34>}, {transform_indices = @transform_3, window_bounds = array<i64: 1, 4, 16, 16>}, {transform_indices = @transform_4, window_bounds = array<i64: 1, 4, 16, 16>}, {transform_indices = @transform_5, window_bounds = array<i64: 1, 4, 16, 16>}, {transform_indices = @transform_6, window_bounds = array<i64: 1, 4, 16, 16>}]} {
    %c0 = arith.constant 0 : index
    %c0_0 = arith.constant 0 : index
    %c0_1 = arith.constant 0 : index
    %c0_2 = arith.constant 0 : index
    %0 = vector.load %arg4[%c0, %c0_0, %c0_1, %c0_2] : memref<1x4x16x16xf32, #tpu.memory_space<vmem>>, vector<1x4x16x16xf32>
    %1 = vector.shape_cast %0 : vector<1x4x16x16xf32> to vector<4x16x16xf32>
    %cst = arith.constant dense<0xFF800000> : vector<16x16xf32>
    %2 = vector.multi_reduction <maximumf>, %1, %cst [0] : vector<4x16x16xf32> to vector<16x16xf32>
    %cst_3 = arith.constant dense<0.000000e+00> : vector<16x16xf32>
    %3 = vector.multi_reduction <add>, %1, %cst_3 [0] : vector<4x16x16xf32> to vector<16x16xf32>
    %cst_4 = arith.constant 2.500000e-01 : f32
    %4 = vector.broadcast %cst_4 : f32 to vector<16x16xf32>
    %5 = arith.mulf %3, %4 : vector<16x16xf32>
    %cst_5 = arith.constant dense<0xFF800000> : vector<4x16xf32>
    %6 = vector.multi_reduction <maximumf>, %1, %cst_5 [1] : vector<4x16x16xf32> to vector<4x16xf32>
    %cst_6 = arith.constant dense<0.000000e+00> : vector<4x16xf32>
    %7 = vector.multi_reduction <add>, %1, %cst_6 [1] : vector<4x16x16xf32> to vector<4x16xf32>
    %cst_7 = arith.constant 6.250000e-02 : f32
    %8 = vector.broadcast %cst_7 : f32 to vector<4x16xf32>
    %9 = arith.mulf %7, %8 : vector<4x16xf32>
    %cst_8 = arith.constant dense<0xFF800000> : vector<4x16xf32>
    %10 = vector.multi_reduction <maximumf>, %1, %cst_8 [2] : vector<4x16x16xf32> to vector<4x16xf32>
    %cst_9 = arith.constant dense<0.000000e+00> : vector<4x16xf32>
    %11 = vector.multi_reduction <add>, %1, %cst_9 [2] : vector<4x16x16xf32> to vector<4x16xf32>
    %cst_10 = arith.constant 6.250000e-02 : f32
    %12 = vector.broadcast %cst_10 : f32 to vector<4x16xf32>
    %13 = arith.mulf %11, %12 : vector<4x16xf32>
    %cst_11 = arith.constant 0.000000e+00 : f32
    %14 = vector.broadcast %cst_11 : f32 to vector<2x18x18xf32>
    %c0_12 = arith.constant 0 : index
    %c0_13 = arith.constant 0 : index
    %c0_14 = arith.constant 0 : index
    %15 = vector.load %arg8[%c0_12, %c0_13, %c0_14] : memref<2x18x18xf32, #tpu.memory_space<vmem>>, vector<2x18x18xf32>
    tpu.vector_store %arg8[%c0_12, %c0_13, %c0_14], %14 {strides = array<i32>} : memref<2x18x18xf32, #tpu.memory_space<vmem>>, vector<2x18x18xf32>,
    %c0_15 = arith.constant 0 : index
    %c1 = arith.constant 1 : index
    %c1_16 = arith.constant 1 : index
    %16 = vector.load %arg8[%c0_15, %c1, %c1_16] : memref<2x18x18xf32, #tpu.memory_space<vmem>>, vector<1x16x16xf32>
    %17 = vector.shape_cast %16 : vector<1x16x16xf32> to vector<16x16xf32>
    %18 = vector.shape_cast %2 : vector<16x16xf32> to vector<1x16x16xf32>
    tpu.vector_store %arg8[%c0_15, %c1, %c1_16], %18 {strides = array<i32>} : memref<2x18x18xf32, #tpu.memory_space<vmem>>, vector<1x16x16xf32>,
    %c1_17 = arith.constant 1 : index
    %c1_18 = arith.constant 1 : index
    %c1_19 = arith.constant 1 : index
    %19 = vector.load %arg8[%c1_17, %c1_18, %c1_19] : memref<2x18x18xf32, #tpu.memory_space<vmem>>, vector<1x16x16xf32>
    %20 = vector.shape_cast %19 : vector<1x16x16xf32> to vector<16x16xf32>
    %21 = vector.shape_cast %5 : vector<16x16xf32> to vector<1x16x16xf32>
    tpu.vector_store %arg8[%c1_17, %c1_18, %c1_19], %21 {strides = array<i32>} : memref<2x18x18xf32, #tpu.memory_space<vmem>>, vector<1x16x16xf32>,
    %cst_20 = arith.constant 0.000000e+00 : f32
    %22 = vector.broadcast %cst_20 : f32 to vector<16x16xf32>
    %cst_21 = arith.constant 0.000000e+00 : f32
    %23 = vector.broadcast %cst_21 : f32 to vector<16x16xf32>
    %c0_22 = arith.constant 0 : index
    %24 = memref.load %arg1[%c0_22] : memref<34xf32, #tpu.memory_space<smem>>
    %c0_23 = arith.constant 0 : index
    %c0_24 = arith.constant 0 : index
    %c0_25 = arith.constant 0 : index
    %25 = vector.load %arg8[%c0_23, %c0_24, %c0_25] : memref<2x18x18xf32, #tpu.memory_space<vmem>>, vector<1x16x16xf32>
    %26 = vector.shape_cast %25 : vector<1x16x16xf32> to vector<16x16xf32>
    %27 = vector.broadcast %24 : f32 to vector<16x16xf32>
    %28 = arith.mulf %27, %26 : vector<16x16xf32>
    %29 = arith.addf %22, %28 : vector<16x16xf32>
    %c9 = arith.constant 9 : index
    %30 = memref.load %arg1[%c9] : memref<34xf32, #tpu.memory_space<smem>>
    %c1_26 = arith.constant 1 : index
    %c0_27 = arith.constant 0 : index
    %c0_28 = arith.constant 0 : index
    %31 = vector.load %arg8[%c1_26, %c0_27, %c0_28] : memref<2x18x18xf32, #tpu.memory_space<vmem>>, vector<1x16x16xf32>
    %32 = vector.shape_cast %31 : vector<1x16x16xf32> to vector<16x16xf32>
    %33 = vector.broadcast %30 : f32 to vector<16x16xf32>
    %34 = arith.mulf %33, %32 : vector<16x16xf32>
    %35 = arith.addf %23, %34 : vector<16x16xf32>
    %c1_29 = arith.constant 1 : index
    %36 = memref.load %arg1[%c1_29] : memref<34xf32, #tpu.memory_space<smem>>
    %c0_30 = arith.constant 0 : index
    %c0_31 = arith.constant 0 : index
    %c1_32 = arith.constant 1 : index
    %37 = vector.load %arg8[%c0_30, %c0_31, %c1_32] : memref<2x18x18xf32, #tpu.memory_space<vmem>>, vector<1x16x16xf32>
    %38 = vector.shape_cast %37 : vector<1x16x16xf32> to vector<16x16xf32>
    %39 = vector.broadcast %36 : f32 to vector<16x16xf32>
    %40 = arith.mulf %39, %38 : vector<16x16xf32>
    %41 = arith.addf %29, %40 : vector<16x16xf32>
    %c10 = arith.constant 10 : index
    %42 = memref.load %arg1[%c10] : memref<34xf32, #tpu.memory_space<smem>>
    %c1_33 = arith.constant 1 : index
    %c0_34 = arith.constant 0 : index
    %c1_35 = arith.constant 1 : index
    %43 = vector.load %arg8[%c1_33, %c0_34, %c1_35] : memref<2x18x18xf32, #tpu.memory_space<vmem>>, vector<1x16x16xf32>
    %44 = vector.shape_cast %43 : vector<1x16x16xf32> to vector<16x16xf32>
    %45 = vector.broadcast %42 : f32 to vector<16x16xf32>
    %46 = arith.mulf %45, %44 : vector<16x16xf32>
    %47 = arith.addf %35, %46 : vector<16x16xf32>
    %c2 = arith.constant 2 : index
    %48 = memref.load %arg1[%c2] : memref<34xf32, #tpu.memory_space<smem>>
    %c0_36 = arith.constant 0 : index
    %c0_37 = arith.constant 0 : index
    %c2_38 = arith.constant 2 : index
    %49 = vector.load %arg8[%c0_36, %c0_37, %c2_38] : memref<2x18x18xf32, #tpu.memory_space<vmem>>, vector<1x16x16xf32>
    %50 = vector.shape_cast %49 : vector<1x16x16xf32> to vector<16x16xf32>
    %51 = vector.broadcast %48 : f32 to vector<16x16xf32>
    %52 = arith.mulf %51, %50 : vector<16x16xf32>
    %53 = arith.addf %41, %52 : vector<16x16xf32>
    %c11 = arith.constant 11 : index
    %54 = memref.load %arg1[%c11] : memref<34xf32, #tpu.memory_space<smem>>
    %c1_39 = arith.constant 1 : index
    %c0_40 = arith.constant 0 : index
    %c2_41 = arith.constant 2 : index
    %55 = vector.load %arg8[%c1_39, %c0_40, %c2_41] : memref<2x18x18xf32, #tpu.memory_space<vmem>>, vector<1x16x16xf32>
    %56 = vector.shape_cast %55 : vector<1x16x16xf32> to vector<16x16xf32>
    %57 = vector.broadcast %54 : f32 to vector<16x16xf32>
    %58 = arith.mulf %57, %56 : vector<16x16xf32>
    %59 = arith.addf %47, %58 : vector<16x16xf32>
    %c3 = arith.constant 3 : index
    %60 = memref.load %arg1[%c3] : memref<34xf32, #tpu.memory_space<smem>>
    %c0_42 = arith.constant 0 : index
    %c1_43 = arith.constant 1 : index
    %c0_44 = arith.constant 0 : index
    %61 = vector.load %arg8[%c0_42, %c1_43, %c0_44] : memref<2x18x18xf32, #tpu.memory_space<vmem>>, vector<1x16x16xf32>
    %62 = vector.shape_cast %61 : vector<1x16x16xf32> to vector<16x16xf32>
    %63 = vector.broadcast %60 : f32 to vector<16x16xf32>
    %64 = arith.mulf %63, %62 : vector<16x16xf32>
    %65 = arith.addf %53, %64 : vector<16x16xf32>
    %c12 = arith.constant 12 : index
    %66 = memref.load %arg1[%c12] : memref<34xf32, #tpu.memory_space<smem>>
    %c1_45 = arith.constant 1 : index
    %c1_46 = arith.constant 1 : index
    %c0_47 = arith.constant 0 : index
    %67 = vector.load %arg8[%c1_45, %c1_46, %c0_47] : memref<2x18x18xf32, #tpu.memory_space<vmem>>, vector<1x16x16xf32>
    %68 = vector.shape_cast %67 : vector<1x16x16xf32> to vector<16x16xf32>
    %69 = vector.broadcast %66 : f32 to vector<16x16xf32>
    %70 = arith.mulf %69, %68 : vector<16x16xf32>
    %71 = arith.addf %59, %70 : vector<16x16xf32>
    %c4 = arith.constant 4 : index
    %72 = memref.load %arg1[%c4] : memref<34xf32, #tpu.memory_space<smem>>
    %c0_48 = arith.constant 0 : index
    %c1_49 = arith.constant 1 : index
    %c1_50 = arith.constant 1 : index
    %73 = vector.load %arg8[%c0_48, %c1_49, %c1_50] : memref<2x18x18xf32, #tpu.memory_space<vmem>>, vector<1x16x16xf32>
    %74 = vector.shape_cast %73 : vector<1x16x16xf32> to vector<16x16xf32>
    %75 = vector.broadcast %72 : f32 to vector<16x16xf32>
    %76 = arith.mulf %75, %74 : vector<16x16xf32>
    %77 = arith.addf %65, %76 : vector<16x16xf32>
    %c13 = arith.constant 13 : index
    %78 = memref.load %arg1[%c13] : memref<34xf32, #tpu.memory_space<smem>>
    %c1_51 = arith.constant 1 : index
    %c1_52 = arith.constant 1 : index
    %c1_53 = arith.constant 1 : index
    %79 = vector.load %arg8[%c1_51, %c1_52, %c1_53] : memref<2x18x18xf32, #tpu.memory_space<vmem>>, vector<1x16x16xf32>
    %80 = vector.shape_cast %79 : vector<1x16x16xf32> to vector<16x16xf32>
    %81 = vector.broadcast %78 : f32 to vector<16x16xf32>
    %82 = arith.mulf %81, %80 : vector<16x16xf32>
    %83 = arith.addf %71, %82 : vector<16x16xf32>
    %c5 = arith.constant 5 : index
    %84 = memref.load %arg1[%c5] : memref<34xf32, #tpu.memory_space<smem>>
    %c0_54 = arith.constant 0 : index
    %c1_55 = arith.constant 1 : index
    %c2_56 = arith.constant 2 : index
    %85 = vector.load %arg8[%c0_54, %c1_55, %c2_56] : memref<2x18x18xf32, #tpu.memory_space<vmem>>, vector<1x16x16xf32>
    %86 = vector.shape_cast %85 : vector<1x16x16xf32> to vector<16x16xf32>
    %87 = vector.broadcast %84 : f32 to vector<16x16xf32>
    %88 = arith.mulf %87, %86 : vector<16x16xf32>
    %89 = arith.addf %77, %88 : vector<16x16xf32>
    %c14 = arith.constant 14 : index
    %90 = memref.load %arg1[%c14] : memref<34xf32, #tpu.memory_space<smem>>
    %c1_57 = arith.constant 1 : index
    %c1_58 = arith.constant 1 : index
    %c2_59 = arith.constant 2 : index
    %91 = vector.load %arg8[%c1_57, %c1_58, %c2_59] : memref<2x18x18xf32, #tpu.memory_space<vmem>>, vector<1x16x16xf32>
    %92 = vector.shape_cast %91 : vector<1x16x16xf32> to vector<16x16xf32>
    %93 = vector.broadcast %90 : f32 to vector<16x16xf32>
    %94 = arith.mulf %93, %92 : vector<16x16xf32>
    %95 = arith.addf %83, %94 : vector<16x16xf32>
    %c6 = arith.constant 6 : index
    %96 = memref.load %arg1[%c6] : memref<34xf32, #tpu.memory_space<smem>>
    %c0_60 = arith.constant 0 : index
    %c2_61 = arith.constant 2 : index
    %c0_62 = arith.constant 0 : index
    %97 = vector.load %arg8[%c0_60, %c2_61, %c0_62] : memref<2x18x18xf32, #tpu.memory_space<vmem>>, vector<1x16x16xf32>
    %98 = vector.shape_cast %97 : vector<1x16x16xf32> to vector<16x16xf32>
    %99 = vector.broadcast %96 : f32 to vector<16x16xf32>
    %100 = arith.mulf %99, %98 : vector<16x16xf32>
    %101 = arith.addf %89, %100 : vector<16x16xf32>
    %c15 = arith.constant 15 : index
    %102 = memref.load %arg1[%c15] : memref<34xf32, #tpu.memory_space<smem>>
    %c1_63 = arith.constant 1 : index
    %c2_64 = arith.constant 2 : index
    %c0_65 = arith.constant 0 : index
    %103 = vector.load %arg8[%c1_63, %c2_64, %c0_65] : memref<2x18x18xf32, #tpu.memory_space<vmem>>, vector<1x16x16xf32>
    %104 = vector.shape_cast %103 : vector<1x16x16xf32> to vector<16x16xf32>
    %105 = vector.broadcast %102 : f32 to vector<16x16xf32>
    %106 = arith.mulf %105, %104 : vector<16x16xf32>
    %107 = arith.addf %95, %106 : vector<16x16xf32>
    %c7 = arith.constant 7 : index
    %108 = memref.load %arg1[%c7] : memref<34xf32, #tpu.memory_space<smem>>
    %c0_66 = arith.constant 0 : index
    %c2_67 = arith.constant 2 : index
    %c1_68 = arith.constant 1 : index
    %109 = vector.load %arg8[%c0_66, %c2_67, %c1_68] : memref<2x18x18xf32, #tpu.memory_space<vmem>>, vector<1x16x16xf32>
    %110 = vector.shape_cast %109 : vector<1x16x16xf32> to vector<16x16xf32>
    %111 = vector.broadcast %108 : f32 to vector<16x16xf32>
    %112 = arith.mulf %111, %110 : vector<16x16xf32>
    %113 = arith.addf %101, %112 : vector<16x16xf32>
    %c16 = arith.constant 16 : index
    %114 = memref.load %arg1[%c16] : memref<34xf32, #tpu.memory_space<smem>>
    %c1_69 = arith.constant 1 : index
    %c2_70 = arith.constant 2 : index
    %c1_71 = arith.constant 1 : index
    %115 = vector.load %arg8[%c1_69, %c2_70, %c1_71] : memref<2x18x18xf32, #tpu.memory_space<vmem>>, vector<1x16x16xf32>
    %116 = vector.shape_cast %115 : vector<1x16x16xf32> to vector<16x16xf32>
    %117 = vector.broadcast %114 : f32 to vector<16x16xf32>
    %118 = arith.mulf %117, %116 : vector<16x16xf32>
    %119 = arith.addf %107, %118 : vector<16x16xf32>
    %c8 = arith.constant 8 : index
    %120 = memref.load %arg1[%c8] : memref<34xf32, #tpu.memory_space<smem>>
    %c0_72 = arith.constant 0 : index
    %c2_73 = arith.constant 2 : index
    %c2_74 = arith.constant 2 : index
    %121 = vector.load %arg8[%c0_72, %c2_73, %c2_74] : memref<2x18x18xf32, #tpu.memory_space<vmem>>, vector<1x16x16xf32>
    %122 = vector.shape_cast %121 : vector<1x16x16xf32> to vector<16x16xf32>
    %123 = vector.broadcast %120 : f32 to vector<16x16xf32>
    %124 = arith.mulf %123, %122 : vector<16x16xf32>
    %125 = arith.addf %113, %124 : vector<16x16xf32>
    %c17 = arith.constant 17 : index
    %126 = memref.load %arg1[%c17] : memref<34xf32, #tpu.memory_space<smem>>
    %c1_75 = arith.constant 1 : index
    %c2_76 = arith.constant 2 : index
    %c2_77 = arith.constant 2 : index
    %127 = vector.load %arg8[%c1_75, %c2_76, %c2_77] : memref<2x18x18xf32, #tpu.memory_space<vmem>>, vector<1x16x16xf32>
    %128 = vector.shape_cast %127 : vector<1x16x16xf32> to vector<16x16xf32>
    %129 = vector.broadcast %126 : f32 to vector<16x16xf32>
    %130 = arith.mulf %129, %128 : vector<16x16xf32>
    %131 = arith.addf %119, %130 : vector<16x16xf32>
    %c18 = arith.constant 18 : index
    %132 = memref.load %arg1[%c18] : memref<34xf32, #tpu.memory_space<smem>>
    %133 = vector.broadcast %132 : f32 to vector<16x16xf32>
    %134 = arith.addf %125, %133 : vector<16x16xf32>
    %c19 = arith.constant 19 : index
    %135 = memref.load %arg1[%c19] : memref<34xf32, #tpu.memory_space<smem>>
    %136 = vector.broadcast %135 : f32 to vector<16x16xf32>
    %137 = arith.addf %131, %136 : vector<16x16xf32>
    %c20 = arith.constant 20 : index
    %138 = memref.load %arg1[%c20] : memref<34xf32, #tpu.memory_space<smem>>
    %139 = vector.broadcast %138 : f32 to vector<16x16xf32>
    %140 = arith.mulf %139, %134 : vector<16x16xf32>
    %c21 = arith.constant 21 : index
    %141 = memref.load %arg1[%c21] : memref<34xf32, #tpu.memory_space<smem>>
    %142 = vector.broadcast %141 : f32 to vector<16x16xf32>
    %143 = arith.mulf %142, %137 : vector<16x16xf32>
    %144 = arith.addf %140, %143 : vector<16x16xf32>
    %c24 = arith.constant 24 : index
    %145 = memref.load %arg1[%c24] : memref<34xf32, #tpu.memory_space<smem>>
    %146 = vector.broadcast %145 : f32 to vector<16x16xf32>
    %147 = arith.addf %144, %146 : vector<16x16xf32>
    %c22 = arith.constant 22 : index
    %148 = memref.load %arg1[%c22] : memref<34xf32, #tpu.memory_space<smem>>
    %149 = vector.broadcast %148 : f32 to vector<16x16xf32>
    %150 = arith.mulf %149, %134 : vector<16x16xf32>
    %c23 = arith.constant 23 : index
    %151 = memref.load %arg1[%c23] : memref<34xf32, #tpu.memory_space<smem>>
    %152 = vector.broadcast %151 : f32 to vector<16x16xf32>
    %153 = arith.mulf %152, %137 : vector<16x16xf32>
    %154 = arith.addf %150, %153 : vector<16x16xf32>
    %c25 = arith.constant 25 : index
    %155 = memref.load %arg1[%c25] : memref<34xf32, #tpu.memory_space<smem>>
    %156 = vector.broadcast %155 : f32 to vector<16x16xf32>
    %157 = arith.addf %154, %156 : vector<16x16xf32>
    %cst_78 = arith.constant dense<0.000000e+00> : vector<16xf32>
    %158 = vector.multi_reduction <add>, %147, %cst_78 [1] : vector<16x16xf32> to vector<16xf32>
    %159 = vector.shape_cast %158 : vector<16xf32> to vector<16x1xf32>
    %cst_79 = arith.constant dense<0.000000e+00> : vector<1xf32>
    %160 = vector.multi_reduction <add>, %159, %cst_79 [0] : vector<16x1xf32> to vector<1xf32>
    %161 = vector.shape_cast %160 : vector<1xf32> to vector<1x1xf32>
    %cst_80 = arith.constant 3.906250e-03 : f32
    %162 = vector.broadcast %cst_80 : f32 to vector<1x1xf32>
    %163 = arith.mulf %161, %162 : vector<1x1xf32>
    %164 = vector.broadcast %163 : vector<1x1xf32> to vector<16x16xf32>
    %165 = arith.subf %147, %164 : vector<16x16xf32>
    %166 = arith.mulf %165, %165 : vector<16x16xf32>
    %cst_81 = arith.constant dense<0.000000e+00> : vector<16xf32>
    %167 = vector.multi_reduction <add>, %166, %cst_81 [1] : vector<16x16xf32> to vector<16xf32>
    %168 = vector.shape_cast %167 : vector<16xf32> to vector<16x1xf32>
    %cst_82 = arith.constant dense<0.000000e+00> : vector<1xf32>
    %169 = vector.multi_reduction <add>, %168, %cst_82 [0] : vector<16x1xf32> to vector<1xf32>
    %170 = vector.shape_cast %169 : vector<1xf32> to vector<1x1xf32>
    %cst_83 = arith.constant 3.906250e-03 : f32
    %171 = vector.broadcast %cst_83 : f32 to vector<1x1xf32>
    %172 = arith.mulf %170, %171 : vector<1x1xf32>
    %cst_84 = arith.constant 9.99999974E-6 : f32
    %173 = vector.broadcast %cst_84 : f32 to vector<1x1xf32>
    %174 = arith.addf %172, %173 : vector<1x1xf32>
    %175 = math.rsqrt %174 : vector<1x1xf32>
    %c26 = arith.constant 26 : index
    %176 = memref.load %arg1[%c26] : memref<34xf32, #tpu.memory_space<smem>>
    %177 = vector.broadcast %176 : f32 to vector<1x1xf32>
    %178 = arith.mulf %175, %177 : vector<1x1xf32>
    %179 = vector.broadcast %178 : vector<1x1xf32> to vector<16x16xf32>
    %180 = arith.mulf %165, %179 : vector<16x16xf32>
    %c27 = arith.constant 27 : index
    %181 = memref.load %arg1[%c27] : memref<34xf32, #tpu.memory_space<smem>>
    %182 = vector.broadcast %181 : f32 to vector<16x16xf32>
    %183 = arith.addf %180, %182 : vector<16x16xf32>
    %c30 = arith.constant 30 : index
    %184 = memref.load %arg1[%c30] : memref<34xf32, #tpu.memory_space<smem>>
    %c29 = arith.constant 29 : index
    %185 = memref.load %arg1[%c29] : memref<34xf32, #tpu.memory_space<smem>>
    %cst_85 = arith.constant 9.99999974E-6 : f32
    %186 = arith.addf %185, %cst_85 : f32
    %187 = math.sqrt %186 : f32
    %188 = arith.divf %184, %187 : f32
    %c28 = arith.constant 28 : index
    %189 = memref.load %arg1[%c28] : memref<34xf32, #tpu.memory_space<smem>>
    %190 = vector.broadcast %189 : f32 to vector<16x16xf32>
    %191 = arith.subf %157, %190 : vector<16x16xf32>
    %192 = vector.broadcast %188 : f32 to vector<16x16xf32>
    %193 = arith.mulf %191, %192 : vector<16x16xf32>
    %c31 = arith.constant 31 : index
    %194 = memref.load %arg1[%c31] : memref<34xf32, #tpu.memory_space<smem>>
    %195 = vector.broadcast %194 : f32 to vector<16x16xf32>
    %196 = arith.addf %193, %195 : vector<16x16xf32>
    %c32 = arith.constant 32 : index
    %197 = memref.load %arg1[%c32] : memref<34xf32, #tpu.memory_space<smem>>
    %198 = vector.broadcast %197 : f32 to vector<16x16xf32>
    %199 = arith.mulf %198, %183 : vector<16x16xf32>
    %c33 = arith.constant 33 : index
    %200 = memref.load %arg1[%c33] : memref<34xf32, #tpu.memory_space<smem>>
    %201 = vector.broadcast %200 : f32 to vector<16x16xf32>
    %202 = arith.mulf %201, %196 : vector<16x16xf32>
    %203 = arith.addf %199, %202 : vector<16x16xf32>
    %204 = arith.negf %203 : vector<16x16xf32>
    %205 = math.exp %204 : vector<16x16xf32>
    %cst_86 = arith.constant 1.000000e+00 : f32
    %206 = vector.broadcast %cst_86 : f32 to vector<16x16xf32>
    %207 = arith.addf %206, %205 : vector<16x16xf32>
    %208 = arith.divf %206, %207 : vector<16x16xf32>
    %cst_87 = arith.constant 0.000000e+00 : f32
    %209 = vector.broadcast %cst_87 : f32 to vector<2x6x18xf32>
    %c0_88 = arith.constant 0 : index
    %c0_89 = arith.constant 0 : index
    %c0_90 = arith.constant 0 : index
    %210 = vector.load %arg9[%c0_88, %c0_89, %c0_90] : memref<2x6x18xf32, #tpu.memory_space<vmem>>, vector<2x6x18xf32>
    tpu.vector_store %arg9[%c0_88, %c0_89, %c0_90], %209 {strides = array<i32>} : memref<2x6x18xf32, #tpu.memory_space<vmem>>, vector<2x6x18xf32>,
    %c0_91 = arith.constant 0 : index
    %c1_92 = arith.constant 1 : index
    %c1_93 = arith.constant 1 : index
    %211 = vector.load %arg9[%c0_91, %c1_92, %c1_93] : memref<2x6x18xf32, #tpu.memory_space<vmem>>, vector<1x4x16xf32>
    %212 = vector.shape_cast %211 : vector<1x4x16xf32> to vector<4x16xf32>
    %213 = vector.shape_cast %6 : vector<4x16xf32> to vector<1x4x16xf32>
    tpu.vector_store %arg9[%c0_91, %c1_92, %c1_93], %213 {strides = array<i32>} : memref<2x6x18xf32, #tpu.memory_space<vmem>>, vector<1x4x16xf32>,
    %c1_94 = arith.constant 1 : index
    %c1_95 = arith.constant 1 : index
    %c1_96 = arith.constant 1 : index
    %214 = vector.load %arg9[%c1_94, %c1_95, %c1_96] : memref<2x6x18xf32, #tpu.memory_space<vmem>>, vector<1x4x16xf32>
    %215 = vector.shape_cast %214 : vector<1x4x16xf32> to vector<4x16xf32>
    %216 = vector.shape_cast %9 : vector<4x16xf32> to vector<1x4x16xf32>
    tpu.vector_store %arg9[%c1_94, %c1_95, %c1_96], %216 {strides = array<i32>} : memref<2x6x18xf32, #tpu.memory_space<vmem>>, vector<1x4x16xf32>,
    %cst_97 = arith.constant 0.000000e+00 : f32
    %217 = vector.broadcast %cst_97 : f32 to vector<4x16xf32>
    %cst_98 = arith.constant 0.000000e+00 : f32
    %218 = vector.broadcast %cst_98 : f32 to vector<4x16xf32>
    %c0_99 = arith.constant 0 : index
    %219 = memref.load %arg2[%c0_99] : memref<34xf32, #tpu.memory_space<smem>>
    %c0_100 = arith.constant 0 : index
    %c0_101 = arith.constant 0 : index
    %c0_102 = arith.constant 0 : index
    %220 = vector.load %arg9[%c0_100, %c0_101, %c0_102] : memref<2x6x18xf32, #tpu.memory_space<vmem>>, vector<1x4x16xf32>
    %221 = vector.shape_cast %220 : vector<1x4x16xf32> to vector<4x16xf32>
    %222 = vector.broadcast %219 : f32 to vector<4x16xf32>
    %223 = arith.mulf %222, %221 : vector<4x16xf32>
    %224 = arith.addf %217, %223 : vector<4x16xf32>
    %c9_103 = arith.constant 9 : index
    %225 = memref.load %arg2[%c9_103] : memref<34xf32, #tpu.memory_space<smem>>
    %c1_104 = arith.constant 1 : index
    %c0_105 = arith.constant 0 : index
    %c0_106 = arith.constant 0 : index
    %226 = vector.load %arg9[%c1_104, %c0_105, %c0_106] : memref<2x6x18xf32, #tpu.memory_space<vmem>>, vector<1x4x16xf32>
    %227 = vector.shape_cast %226 : vector<1x4x16xf32> to vector<4x16xf32>
    %228 = vector.broadcast %225 : f32 to vector<4x16xf32>
    %229 = arith.mulf %228, %227 : vector<4x16xf32>
    %230 = arith.addf %218, %229 : vector<4x16xf32>
    %c1_107 = arith.constant 1 : index
    %231 = memref.load %arg2[%c1_107] : memref<34xf32, #tpu.memory_space<smem>>
    %c0_108 = arith.constant 0 : index
    %c0_109 = arith.constant 0 : index
    %c1_110 = arith.constant 1 : index
    %232 = vector.load %arg9[%c0_108, %c0_109, %c1_110] : memref<2x6x18xf32, #tpu.memory_space<vmem>>, vector<1x4x16xf32>
    %233 = vector.shape_cast %232 : vector<1x4x16xf32> to vector<4x16xf32>
    %234 = vector.broadcast %231 : f32 to vector<4x16xf32>
    %235 = arith.mulf %234, %233 : vector<4x16xf32>
    %236 = arith.addf %224, %235 : vector<4x16xf32>
    %c10_111 = arith.constant 10 : index
    %237 = memref.load %arg2[%c10_111] : memref<34xf32, #tpu.memory_space<smem>>
    %c1_112 = arith.constant 1 : index
    %c0_113 = arith.constant 0 : index
    %c1_114 = arith.constant 1 : index
    %238 = vector.load %arg9[%c1_112, %c0_113, %c1_114] : memref<2x6x18xf32, #tpu.memory_space<vmem>>, vector<1x4x16xf32>
    %239 = vector.shape_cast %238 : vector<1x4x16xf32> to vector<4x16xf32>
    %240 = vector.broadcast %237 : f32 to vector<4x16xf32>
    %241 = arith.mulf %240, %239 : vector<4x16xf32>
    %242 = arith.addf %230, %241 : vector<4x16xf32>
    %c2_115 = arith.constant 2 : index
    %243 = memref.load %arg2[%c2_115] : memref<34xf32, #tpu.memory_space<smem>>
    %c0_116 = arith.constant 0 : index
    %c0_117 = arith.constant 0 : index
    %c2_118 = arith.constant 2 : index
    %244 = vector.load %arg9[%c0_116, %c0_117, %c2_118] : memref<2x6x18xf32, #tpu.memory_space<vmem>>, vector<1x4x16xf32>
    %245 = vector.shape_cast %244 : vector<1x4x16xf32> to vector<4x16xf32>
    %246 = vector.broadcast %243 : f32 to vector<4x16xf32>
    %247 = arith.mulf %246, %245 : vector<4x16xf32>
    %248 = arith.addf %236, %247 : vector<4x16xf32>
    %c11_119 = arith.constant 11 : index
    %249 = memref.load %arg2[%c11_119] : memref<34xf32, #tpu.memory_space<smem>>
    %c1_120 = arith.constant 1 : index
    %c0_121 = arith.constant 0 : index
    %c2_122 = arith.constant 2 : index
    %250 = vector.load %arg9[%c1_120, %c0_121, %c2_122] : memref<2x6x18xf32, #tpu.memory_space<vmem>>, vector<1x4x16xf32>
    %251 = vector.shape_cast %250 : vector<1x4x16xf32> to vector<4x16xf32>
    %252 = vector.broadcast %249 : f32 to vector<4x16xf32>
    %253 = arith.mulf %252, %251 : vector<4x16xf32>
    %254 = arith.addf %242, %253 : vector<4x16xf32>
    %c3_123 = arith.constant 3 : index
    %255 = memref.load %arg2[%c3_123] : memref<34xf32, #tpu.memory_space<smem>>
    %c0_124 = arith.constant 0 : index
    %c1_125 = arith.constant 1 : index
    %c0_126 = arith.constant 0 : index
    %256 = vector.load %arg9[%c0_124, %c1_125, %c0_126] : memref<2x6x18xf32, #tpu.memory_space<vmem>>, vector<1x4x16xf32>
    %257 = vector.shape_cast %256 : vector<1x4x16xf32> to vector<4x16xf32>
    %258 = vector.broadcast %255 : f32 to vector<4x16xf32>
    %259 = arith.mulf %258, %257 : vector<4x16xf32>
    %260 = arith.addf %248, %259 : vector<4x16xf32>
    %c12_127 = arith.constant 12 : index
    %261 = memref.load %arg2[%c12_127] : memref<34xf32, #tpu.memory_space<smem>>
    %c1_128 = arith.constant 1 : index
    %c1_129 = arith.constant 1 : index
    %c0_130 = arith.constant 0 : index
    %262 = vector.load %arg9[%c1_128, %c1_129, %c0_130] : memref<2x6x18xf32, #tpu.memory_space<vmem>>, vector<1x4x16xf32>
    %263 = vector.shape_cast %262 : vector<1x4x16xf32> to vector<4x16xf32>
    %264 = vector.broadcast %261 : f32 to vector<4x16xf32>
    %265 = arith.mulf %264, %263 : vector<4x16xf32>
    %266 = arith.addf %254, %265 : vector<4x16xf32>
    %c4_131 = arith.constant 4 : index
    %267 = memref.load %arg2[%c4_131] : memref<34xf32, #tpu.memory_space<smem>>
    %c0_132 = arith.constant 0 : index
    %c1_133 = arith.constant 1 : index
    %c1_134 = arith.constant 1 : index
    %268 = vector.load %arg9[%c0_132, %c1_133, %c1_134] : memref<2x6x18xf32, #tpu.memory_space<vmem>>, vector<1x4x16xf32>
    %269 = vector.shape_cast %268 : vector<1x4x16xf32> to vector<4x16xf32>
    %270 = vector.broadcast %267 : f32 to vector<4x16xf32>
    %271 = arith.mulf %270, %269 : vector<4x16xf32>
    %272 = arith.addf %260, %271 : vector<4x16xf32>
    %c13_135 = arith.constant 13 : index
    %273 = memref.load %arg2[%c13_135] : memref<34xf32, #tpu.memory_space<smem>>
    %c1_136 = arith.constant 1 : index
    %c1_137 = arith.constant 1 : index
    %c1_138 = arith.constant 1 : index
    %274 = vector.load %arg9[%c1_136, %c1_137, %c1_138] : memref<2x6x18xf32, #tpu.memory_space<vmem>>, vector<1x4x16xf32>
    %275 = vector.shape_cast %274 : vector<1x4x16xf32> to vector<4x16xf32>
    %276 = vector.broadcast %273 : f32 to vector<4x16xf32>
    %277 = arith.mulf %276, %275 : vector<4x16xf32>
    %278 = arith.addf %266, %277 : vector<4x16xf32>
    %c5_139 = arith.constant 5 : index
    %279 = memref.load %arg2[%c5_139] : memref<34xf32, #tpu.memory_space<smem>>
    %c0_140 = arith.constant 0 : index
    %c1_141 = arith.constant 1 : index
    %c2_142 = arith.constant 2 : index
    %280 = vector.load %arg9[%c0_140, %c1_141, %c2_142] : memref<2x6x18xf32, #tpu.memory_space<vmem>>, vector<1x4x16xf32>
    %281 = vector.shape_cast %280 : vector<1x4x16xf32> to vector<4x16xf32>
    %282 = vector.broadcast %279 : f32 to vector<4x16xf32>
    %283 = arith.mulf %282, %281 : vector<4x16xf32>
    %284 = arith.addf %272, %283 : vector<4x16xf32>
    %c14_143 = arith.constant 14 : index
    %285 = memref.load %arg2[%c14_143] : memref<34xf32, #tpu.memory_space<smem>>
    %c1_144 = arith.constant 1 : index
    %c1_145 = arith.constant 1 : index
    %c2_146 = arith.constant 2 : index
    %286 = vector.load %arg9[%c1_144, %c1_145, %c2_146] : memref<2x6x18xf32, #tpu.memory_space<vmem>>, vector<1x4x16xf32>
    %287 = vector.shape_cast %286 : vector<1x4x16xf32> to vector<4x16xf32>
    %288 = vector.broadcast %285 : f32 to vector<4x16xf32>
    %289 = arith.mulf %288, %287 : vector<4x16xf32>
    %290 = arith.addf %278, %289 : vector<4x16xf32>
    %c6_147 = arith.constant 6 : index
    %291 = memref.load %arg2[%c6_147] : memref<34xf32, #tpu.memory_space<smem>>
    %c0_148 = arith.constant 0 : index
    %c2_149 = arith.constant 2 : index
    %c0_150 = arith.constant 0 : index
    %292 = vector.load %arg9[%c0_148, %c2_149, %c0_150] : memref<2x6x18xf32, #tpu.memory_space<vmem>>, vector<1x4x16xf32>
    %293 = vector.shape_cast %292 : vector<1x4x16xf32> to vector<4x16xf32>
    %294 = vector.broadcast %291 : f32 to vector<4x16xf32>
    %295 = arith.mulf %294, %293 : vector<4x16xf32>
    %296 = arith.addf %284, %295 : vector<4x16xf32>
    %c15_151 = arith.constant 15 : index
    %297 = memref.load %arg2[%c15_151] : memref<34xf32, #tpu.memory_space<smem>>
    %c1_152 = arith.constant 1 : index
    %c2_153 = arith.constant 2 : index
    %c0_154 = arith.constant 0 : index
    %298 = vector.load %arg9[%c1_152, %c2_153, %c0_154] : memref<2x6x18xf32, #tpu.memory_space<vmem>>, vector<1x4x16xf32>
    %299 = vector.shape_cast %298 : vector<1x4x16xf32> to vector<4x16xf32>
    %300 = vector.broadcast %297 : f32 to vector<4x16xf32>
    %301 = arith.mulf %300, %299 : vector<4x16xf32>
    %302 = arith.addf %290, %301 : vector<4x16xf32>
    %c7_155 = arith.constant 7 : index
    %303 = memref.load %arg2[%c7_155] : memref<34xf32, #tpu.memory_space<smem>>
    %c0_156 = arith.constant 0 : index
    %c2_157 = arith.constant 2 : index
    %c1_158 = arith.constant 1 : index
    %304 = vector.load %arg9[%c0_156, %c2_157, %c1_158] : memref<2x6x18xf32, #tpu.memory_space<vmem>>, vector<1x4x16xf32>
    %305 = vector.shape_cast %304 : vector<1x4x16xf32> to vector<4x16xf32>
    %306 = vector.broadcast %303 : f32 to vector<4x16xf32>
    %307 = arith.mulf %306, %305 : vector<4x16xf32>
    %308 = arith.addf %296, %307 : vector<4x16xf32>
    %c16_159 = arith.constant 16 : index
    %309 = memref.load %arg2[%c16_159] : memref<34xf32, #tpu.memory_space<smem>>
    %c1_160 = arith.constant 1 : index
    %c2_161 = arith.constant 2 : index
    %c1_162 = arith.constant 1 : index
    %310 = vector.load %arg9[%c1_160, %c2_161, %c1_162] : memref<2x6x18xf32, #tpu.memory_space<vmem>>, vector<1x4x16xf32>
    %311 = vector.shape_cast %310 : vector<1x4x16xf32> to vector<4x16xf32>
    %312 = vector.broadcast %309 : f32 to vector<4x16xf32>
    %313 = arith.mulf %312, %311 : vector<4x16xf32>
    %314 = arith.addf %302, %313 : vector<4x16xf32>
    %c8_163 = arith.constant 8 : index
    %315 = memref.load %arg2[%c8_163] : memref<34xf32, #tpu.memory_space<smem>>
    %c0_164 = arith.constant 0 : index
    %c2_165 = arith.constant 2 : index
    %c2_166 = arith.constant 2 : index
    %316 = vector.load %arg9[%c0_164, %c2_165, %c2_166] : memref<2x6x18xf32, #tpu.memory_space<vmem>>, vector<1x4x16xf32>
    %317 = vector.shape_cast %316 : vector<1x4x16xf32> to vector<4x16xf32>
    %318 = vector.broadcast %315 : f32 to vector<4x16xf32>
    %319 = arith.mulf %318, %317 : vector<4x16xf32>
    %320 = arith.addf %308, %319 : vector<4x16xf32>
    %c17_167 = arith.constant 17 : index
    %321 = memref.load %arg2[%c17_167] : memref<34xf32, #tpu.memory_space<smem>>
    %c1_168 = arith.constant 1 : index
    %c2_169 = arith.constant 2 : index
    %c2_170 = arith.constant 2 : index
    %322 = vector.load %arg9[%c1_168, %c2_169, %c2_170] : memref<2x6x18xf32, #tpu.memory_space<vmem>>, vector<1x4x16xf32>
    %323 = vector.shape_cast %322 : vector<1x4x16xf32> to vector<4x16xf32>
    %324 = vector.broadcast %321 : f32 to vector<4x16xf32>
    %325 = arith.mulf %324, %323 : vector<4x16xf32>
    %326 = arith.addf %314, %325 : vector<4x16xf32>
    %c18_171 = arith.constant 18 : index
    %327 = memref.load %arg2[%c18_171] : memref<34xf32, #tpu.memory_space<smem>>
    %328 = vector.broadcast %327 : f32 to vector<4x16xf32>
    %329 = arith.addf %320, %328 : vector<4x16xf32>
    %c19_172 = arith.constant 19 : index
    %330 = memref.load %arg2[%c19_172] : memref<34xf32, #tpu.memory_space<smem>>
    %331 = vector.broadcast %330 : f32 to vector<4x16xf32>
    %332 = arith.addf %326, %331 : vector<4x16xf32>
    %c20_173 = arith.constant 20 : index
    %333 = memref.load %arg2[%c20_173] : memref<34xf32, #tpu.memory_space<smem>>
    %334 = vector.broadcast %333 : f32 to vector<4x16xf32>
    %335 = arith.mulf %334, %329 : vector<4x16xf32>
    %c21_174 = arith.constant 21 : index
    %336 = memref.load %arg2[%c21_174] : memref<34xf32, #tpu.memory_space<smem>>
    %337 = vector.broadcast %336 : f32 to vector<4x16xf32>
    %338 = arith.mulf %337, %332 : vector<4x16xf32>
    %339 = arith.addf %335, %338 : vector<4x16xf32>
    %c24_175 = arith.constant 24 : index
    %340 = memref.load %arg2[%c24_175] : memref<34xf32, #tpu.memory_space<smem>>
    %341 = vector.broadcast %340 : f32 to vector<4x16xf32>
    %342 = arith.addf %339, %341 : vector<4x16xf32>
    %c22_176 = arith.constant 22 : index
    %343 = memref.load %arg2[%c22_176] : memref<34xf32, #tpu.memory_space<smem>>
    %344 = vector.broadcast %343 : f32 to vector<4x16xf32>
    %345 = arith.mulf %344, %329 : vector<4x16xf32>
    %c23_177 = arith.constant 23 : index
    %346 = memref.load %arg2[%c23_177] : memref<34xf32, #tpu.memory_space<smem>>
    %347 = vector.broadcast %346 : f32 to vector<4x16xf32>
    %348 = arith.mulf %347, %332 : vector<4x16xf32>
    %349 = arith.addf %345, %348 : vector<4x16xf32>
    %c25_178 = arith.constant 25 : index
    %350 = memref.load %arg2[%c25_178] : memref<34xf32, #tpu.memory_space<smem>>
    %351 = vector.broadcast %350 : f32 to vector<4x16xf32>
    %352 = arith.addf %349, %351 : vector<4x16xf32>
    %cst_179 = arith.constant dense<0.000000e+00> : vector<4xf32>
    %353 = vector.multi_reduction <add>, %342, %cst_179 [1] : vector<4x16xf32> to vector<4xf32>
    %354 = vector.shape_cast %353 : vector<4xf32> to vector<4x1xf32>
    %cst_180 = arith.constant dense<0.000000e+00> : vector<1xf32>
    %355 = vector.multi_reduction <add>, %354, %cst_180 [0] : vector<4x1xf32> to vector<1xf32>
    %356 = vector.shape_cast %355 : vector<1xf32> to vector<1x1xf32>
    %cst_181 = arith.constant 1.562500e-02 : f32
    %357 = vector.broadcast %cst_181 : f32 to vector<1x1xf32>
    %358 = arith.mulf %356, %357 : vector<1x1xf32>
    %359 = vector.broadcast %358 : vector<1x1xf32> to vector<4x16xf32>
    %360 = arith.subf %342, %359 : vector<4x16xf32>
    %361 = arith.mulf %360, %360 : vector<4x16xf32>
    %cst_182 = arith.constant dense<0.000000e+00> : vector<4xf32>
    %362 = vector.multi_reduction <add>, %361, %cst_182 [1] : vector<4x16xf32> to vector<4xf32>
    %363 = vector.shape_cast %362 : vector<4xf32> to vector<4x1xf32>
    %cst_183 = arith.constant dense<0.000000e+00> : vector<1xf32>
    %364 = vector.multi_reduction <add>, %363, %cst_183 [0] : vector<4x1xf32> to vector<1xf32>
    %365 = vector.shape_cast %364 : vector<1xf32> to vector<1x1xf32>
    %cst_184 = arith.constant 1.562500e-02 : f32
    %366 = vector.broadcast %cst_184 : f32 to vector<1x1xf32>
    %367 = arith.mulf %365, %366 : vector<1x1xf32>
    %cst_185 = arith.constant 9.99999974E-6 : f32
    %368 = vector.broadcast %cst_185 : f32 to vector<1x1xf32>
    %369 = arith.addf %367, %368 : vector<1x1xf32>
    %370 = math.rsqrt %369 : vector<1x1xf32>
    %c26_186 = arith.constant 26 : index
    %371 = memref.load %arg2[%c26_186] : memref<34xf32, #tpu.memory_space<smem>>
    %372 = vector.broadcast %371 : f32 to vector<1x1xf32>
    %373 = arith.mulf %370, %372 : vector<1x1xf32>
    %374 = vector.broadcast %373 : vector<1x1xf32> to vector<4x16xf32>
    %375 = arith.mulf %360, %374 : vector<4x16xf32>
    %c27_187 = arith.constant 27 : index
    %376 = memref.load %arg2[%c27_187] : memref<34xf32, #tpu.memory_space<smem>>
    %377 = vector.broadcast %376 : f32 to vector<4x16xf32>
    %378 = arith.addf %375, %377 : vector<4x16xf32>
    %c30_188 = arith.constant 30 : index
    %379 = memref.load %arg2[%c30_188] : memref<34xf32, #tpu.memory_space<smem>>
    %c29_189 = arith.constant 29 : index
    %380 = memref.load %arg2[%c29_189] : memref<34xf32, #tpu.memory_space<smem>>
    %cst_190 = arith.constant 9.99999974E-6 : f32
    %381 = arith.addf %380, %cst_190 : f32
    %382 = math.sqrt %381 : f32
    %383 = arith.divf %379, %382 : f32
    %c28_191 = arith.constant 28 : index
    %384 = memref.load %arg2[%c28_191] : memref<34xf32, #tpu.memory_space<smem>>
    %385 = vector.broadcast %384 : f32 to vector<4x16xf32>
    %386 = arith.subf %352, %385 : vector<4x16xf32>
    %387 = vector.broadcast %383 : f32 to vector<4x16xf32>
    %388 = arith.mulf %386, %387 : vector<4x16xf32>
    %c31_192 = arith.constant 31 : index
    %389 = memref.load %arg2[%c31_192] : memref<34xf32, #tpu.memory_space<smem>>
    %390 = vector.broadcast %389 : f32 to vector<4x16xf32>
    %391 = arith.addf %388, %390 : vector<4x16xf32>
    %c32_193 = arith.constant 32 : index
    %392 = memref.load %arg2[%c32_193] : memref<34xf32, #tpu.memory_space<smem>>
    %393 = vector.broadcast %392 : f32 to vector<4x16xf32>
    %394 = arith.mulf %393, %378 : vector<4x16xf32>
    %c33_194 = arith.constant 33 : index
    %395 = memref.load %arg2[%c33_194] : memref<34xf32, #tpu.memory_space<smem>>
    %396 = vector.broadcast %395 : f32 to vector<4x16xf32>
    %397 = arith.mulf %396, %391 : vector<4x16xf32>
    %398 = arith.addf %394, %397 : vector<4x16xf32>
    %399 = arith.negf %398 : vector<4x16xf32>
    %400 = math.exp %399 : vector<4x16xf32>
    %cst_195 = arith.constant 1.000000e+00 : f32
    %401 = vector.broadcast %cst_195 : f32 to vector<4x16xf32>
    %402 = arith.addf %401, %400 : vector<4x16xf32>
    %403 = arith.divf %401, %402 : vector<4x16xf32>
    %cst_196 = arith.constant 0.000000e+00 : f32
    %404 = vector.broadcast %cst_196 : f32 to vector<2x6x18xf32>
    %c0_197 = arith.constant 0 : index
    %c0_198 = arith.constant 0 : index
    %c0_199 = arith.constant 0 : index
    %405 = vector.load %arg10[%c0_197, %c0_198, %c0_199] : memref<2x6x18xf32, #tpu.memory_space<vmem>>, vector<2x6x18xf32>
    tpu.vector_store %arg10[%c0_197, %c0_198, %c0_199], %404 {strides = array<i32>} : memref<2x6x18xf32, #tpu.memory_space<vmem>>, vector<2x6x18xf32>,
    %c0_200 = arith.constant 0 : index
    %c1_201 = arith.constant 1 : index
    %c1_202 = arith.constant 1 : index
    %406 = vector.load %arg10[%c0_200, %c1_201, %c1_202] : memref<2x6x18xf32, #tpu.memory_space<vmem>>, vector<1x4x16xf32>
    %407 = vector.shape_cast %406 : vector<1x4x16xf32> to vector<4x16xf32>
    %408 = vector.shape_cast %10 : vector<4x16xf32> to vector<1x4x16xf32>
    tpu.vector_store %arg10[%c0_200, %c1_201, %c1_202], %408 {strides = array<i32>} : memref<2x6x18xf32, #tpu.memory_space<vmem>>, vector<1x4x16xf32>,
    %c1_203 = arith.constant 1 : index
    %c1_204 = arith.constant 1 : index
    %c1_205 = arith.constant 1 : index
    %409 = vector.load %arg10[%c1_203, %c1_204, %c1_205] : memref<2x6x18xf32, #tpu.memory_space<vmem>>, vector<1x4x16xf32>
    %410 = vector.shape_cast %409 : vector<1x4x16xf32> to vector<4x16xf32>
    %411 = vector.shape_cast %13 : vector<4x16xf32> to vector<1x4x16xf32>
    tpu.vector_store %arg10[%c1_203, %c1_204, %c1_205], %411 {strides = array<i32>} : memref<2x6x18xf32, #tpu.memory_space<vmem>>, vector<1x4x16xf32>,
    %cst_206 = arith.constant 0.000000e+00 : f32
    %412 = vector.broadcast %cst_206 : f32 to vector<4x16xf32>
    %cst_207 = arith.constant 0.000000e+00 : f32
    %413 = vector.broadcast %cst_207 : f32 to vector<4x16xf32>
    %c0_208 = arith.constant 0 : index
    %414 = memref.load %arg3[%c0_208] : memref<34xf32, #tpu.memory_space<smem>>
    %c0_209 = arith.constant 0 : index
    %c0_210 = arith.constant 0 : index
    %c0_211 = arith.constant 0 : index
    %415 = vector.load %arg10[%c0_209, %c0_210, %c0_211] : memref<2x6x18xf32, #tpu.memory_space<vmem>>, vector<1x4x16xf32>
    %416 = vector.shape_cast %415 : vector<1x4x16xf32> to vector<4x16xf32>
    %417 = vector.broadcast %414 : f32 to vector<4x16xf32>
    %418 = arith.mulf %417, %416 : vector<4x16xf32>
    %419 = arith.addf %412, %418 : vector<4x16xf32>
    %c9_212 = arith.constant 9 : index
    %420 = memref.load %arg3[%c9_212] : memref<34xf32, #tpu.memory_space<smem>>
    %c1_213 = arith.constant 1 : index
    %c0_214 = arith.constant 0 : index
    %c0_215 = arith.constant 0 : index
    %421 = vector.load %arg10[%c1_213, %c0_214, %c0_215] : memref<2x6x18xf32, #tpu.memory_space<vmem>>, vector<1x4x16xf32>
    %422 = vector.shape_cast %421 : vector<1x4x16xf32> to vector<4x16xf32>
    %423 = vector.broadcast %420 : f32 to vector<4x16xf32>
    %424 = arith.mulf %423, %422 : vector<4x16xf32>
    %425 = arith.addf %413, %424 : vector<4x16xf32>
    %c3_216 = arith.constant 3 : index
    %426 = memref.load %arg3[%c3_216] : memref<34xf32, #tpu.memory_space<smem>>
    %c0_217 = arith.constant 0 : index
    %c0_218 = arith.constant 0 : index
    %c1_219 = arith.constant 1 : index
    %427 = vector.load %arg10[%c0_217, %c0_218, %c1_219] : memref<2x6x18xf32, #tpu.memory_space<vmem>>, vector<1x4x16xf32>
    %428 = vector.shape_cast %427 : vector<1x4x16xf32> to vector<4x16xf32>
    %429 = vector.broadcast %426 : f32 to vector<4x16xf32>
    %430 = arith.mulf %429, %428 : vector<4x16xf32>
    %431 = arith.addf %419, %430 : vector<4x16xf32>
    %c12_220 = arith.constant 12 : index
    %432 = memref.load %arg3[%c12_220] : memref<34xf32, #tpu.memory_space<smem>>
    %c1_221 = arith.constant 1 : index
    %c0_222 = arith.constant 0 : index
    %c1_223 = arith.constant 1 : index
    %433 = vector.load %arg10[%c1_221, %c0_222, %c1_223] : memref<2x6x18xf32, #tpu.memory_space<vmem>>, vector<1x4x16xf32>
    %434 = vector.shape_cast %433 : vector<1x4x16xf32> to vector<4x16xf32>
    %435 = vector.broadcast %432 : f32 to vector<4x16xf32>
    %436 = arith.mulf %435, %434 : vector<4x16xf32>
    %437 = arith.addf %425, %436 : vector<4x16xf32>
    %c6_224 = arith.constant 6 : index
    %438 = memref.load %arg3[%c6_224] : memref<34xf32, #tpu.memory_space<smem>>
    %c0_225 = arith.constant 0 : index
    %c0_226 = arith.constant 0 : index
    %c2_227 = arith.constant 2 : index
    %439 = vector.load %arg10[%c0_225, %c0_226, %c2_227] : memref<2x6x18xf32, #tpu.memory_space<vmem>>, vector<1x4x16xf32>
    %440 = vector.shape_cast %439 : vector<1x4x16xf32> to vector<4x16xf32>
    %441 = vector.broadcast %438 : f32 to vector<4x16xf32>
    %442 = arith.mulf %441, %440 : vector<4x16xf32>
    %443 = arith.addf %431, %442 : vector<4x16xf32>
    %c15_228 = arith.constant 15 : index
    %444 = memref.load %arg3[%c15_228] : memref<34xf32, #tpu.memory_space<smem>>
    %c1_229 = arith.constant 1 : index
    %c0_230 = arith.constant 0 : index
    %c2_231 = arith.constant 2 : index
    %445 = vector.load %arg10[%c1_229, %c0_230, %c2_231] : memref<2x6x18xf32, #tpu.memory_space<vmem>>, vector<1x4x16xf32>
    %446 = vector.shape_cast %445 : vector<1x4x16xf32> to vector<4x16xf32>
    %447 = vector.broadcast %444 : f32 to vector<4x16xf32>
    %448 = arith.mulf %447, %446 : vector<4x16xf32>
    %449 = arith.addf %437, %448 : vector<4x16xf32>
    %c1_232 = arith.constant 1 : index
    %450 = memref.load %arg3[%c1_232] : memref<34xf32, #tpu.memory_space<smem>>
    %c0_233 = arith.constant 0 : index
    %c1_234 = arith.constant 1 : index
    %c0_235 = arith.constant 0 : index
    %451 = vector.load %arg10[%c0_233, %c1_234, %c0_235] : memref<2x6x18xf32, #tpu.memory_space<vmem>>, vector<1x4x16xf32>
    %452 = vector.shape_cast %451 : vector<1x4x16xf32> to vector<4x16xf32>
    %453 = vector.broadcast %450 : f32 to vector<4x16xf32>
    %454 = arith.mulf %453, %452 : vector<4x16xf32>
    %455 = arith.addf %443, %454 : vector<4x16xf32>
    %c10_236 = arith.constant 10 : index
    %456 = memref.load %arg3[%c10_236] : memref<34xf32, #tpu.memory_space<smem>>
    %c1_237 = arith.constant 1 : index
    %c1_238 = arith.constant 1 : index
    %c0_239 = arith.constant 0 : index
    %457 = vector.load %arg10[%c1_237, %c1_238, %c0_239] : memref<2x6x18xf32, #tpu.memory_space<vmem>>, vector<1x4x16xf32>
    %458 = vector.shape_cast %457 : vector<1x4x16xf32> to vector<4x16xf32>
    %459 = vector.broadcast %456 : f32 to vector<4x16xf32>
    %460 = arith.mulf %459, %458 : vector<4x16xf32>
    %461 = arith.addf %449, %460 : vector<4x16xf32>
    %c4_240 = arith.constant 4 : index
    %462 = memref.load %arg3[%c4_240] : memref<34xf32, #tpu.memory_space<smem>>
    %c0_241 = arith.constant 0 : index
    %c1_242 = arith.constant 1 : index
    %c1_243 = arith.constant 1 : index
    %463 = vector.load %arg10[%c0_241, %c1_242, %c1_243] : memref<2x6x18xf32, #tpu.memory_space<vmem>>, vector<1x4x16xf32>
    %464 = vector.shape_cast %463 : vector<1x4x16xf32> to vector<4x16xf32>
    %465 = vector.broadcast %462 : f32 to vector<4x16xf32>
    %466 = arith.mulf %465, %464 : vector<4x16xf32>
    %467 = arith.addf %455, %466 : vector<4x16xf32>
    %c13_244 = arith.constant 13 : index
    %468 = memref.load %arg3[%c13_244] : memref<34xf32, #tpu.memory_space<smem>>
    %c1_245 = arith.constant 1 : index
    %c1_246 = arith.constant 1 : index
    %c1_247 = arith.constant 1 : index
    %469 = vector.load %arg10[%c1_245, %c1_246, %c1_247] : memref<2x6x18xf32, #tpu.memory_space<vmem>>, vector<1x4x16xf32>
    %470 = vector.shape_cast %469 : vector<1x4x16xf32> to vector<4x16xf32>
    %471 = vector.broadcast %468 : f32 to vector<4x16xf32>
    %472 = arith.mulf %471, %470 : vector<4x16xf32>
    %473 = arith.addf %461, %472 : vector<4x16xf32>
    %c7_248 = arith.constant 7 : index
    %474 = memref.load %arg3[%c7_248] : memref<34xf32, #tpu.memory_space<smem>>
    %c0_249 = arith.constant 0 : index
    %c1_250 = arith.constant 1 : index
    %c2_251 = arith.constant 2 : index
    %475 = vector.load %arg10[%c0_249, %c1_250, %c2_251] : memref<2x6x18xf32, #tpu.memory_space<vmem>>, vector<1x4x16xf32>
    %476 = vector.shape_cast %475 : vector<1x4x16xf32> to vector<4x16xf32>
    %477 = vector.broadcast %474 : f32 to vector<4x16xf32>
    %478 = arith.mulf %477, %476 : vector<4x16xf32>
    %479 = arith.addf %467, %478 : vector<4x16xf32>
    %c16_252 = arith.constant 16 : index
    %480 = memref.load %arg3[%c16_252] : memref<34xf32, #tpu.memory_space<smem>>
    %c1_253 = arith.constant 1 : index
    %c1_254 = arith.constant 1 : index
    %c2_255 = arith.constant 2 : index
    %481 = vector.load %arg10[%c1_253, %c1_254, %c2_255] : memref<2x6x18xf32, #tpu.memory_space<vmem>>, vector<1x4x16xf32>
    %482 = vector.shape_cast %481 : vector<1x4x16xf32> to vector<4x16xf32>
    %483 = vector.broadcast %480 : f32 to vector<4x16xf32>
    %484 = arith.mulf %483, %482 : vector<4x16xf32>
    %485 = arith.addf %473, %484 : vector<4x16xf32>
    %c2_256 = arith.constant 2 : index
    %486 = memref.load %arg3[%c2_256] : memref<34xf32, #tpu.memory_space<smem>>
    %c0_257 = arith.constant 0 : index
    %c2_258 = arith.constant 2 : index
    %c0_259 = arith.constant 0 : index
    %487 = vector.load %arg10[%c0_257, %c2_258, %c0_259] : memref<2x6x18xf32, #tpu.memory_space<vmem>>, vector<1x4x16xf32>
    %488 = vector.shape_cast %487 : vector<1x4x16xf32> to vector<4x16xf32>
    %489 = vector.broadcast %486 : f32 to vector<4x16xf32>
    %490 = arith.mulf %489, %488 : vector<4x16xf32>
    %491 = arith.addf %479, %490 : vector<4x16xf32>
    %c11_260 = arith.constant 11 : index
    %492 = memref.load %arg3[%c11_260] : memref<34xf32, #tpu.memory_space<smem>>
    %c1_261 = arith.constant 1 : index
    %c2_262 = arith.constant 2 : index
    %c0_263 = arith.constant 0 : index
    %493 = vector.load %arg10[%c1_261, %c2_262, %c0_263] : memref<2x6x18xf32, #tpu.memory_space<vmem>>, vector<1x4x16xf32>
    %494 = vector.shape_cast %493 : vector<1x4x16xf32> to vector<4x16xf32>
    %495 = vector.broadcast %492 : f32 to vector<4x16xf32>
    %496 = arith.mulf %495, %494 : vector<4x16xf32>
    %497 = arith.addf %485, %496 : vector<4x16xf32>
    %c5_264 = arith.constant 5 : index
    %498 = memref.load %arg3[%c5_264] : memref<34xf32, #tpu.memory_space<smem>>
    %c0_265 = arith.constant 0 : index
    %c2_266 = arith.constant 2 : index
    %c1_267 = arith.constant 1 : index
    %499 = vector.load %arg10[%c0_265, %c2_266, %c1_267] : memref<2x6x18xf32, #tpu.memory_space<vmem>>, vector<1x4x16xf32>
    %500 = vector.shape_cast %499 : vector<1x4x16xf32> to vector<4x16xf32>
    %501 = vector.broadcast %498 : f32 to vector<4x16xf32>
    %502 = arith.mulf %501, %500 : vector<4x16xf32>
    %503 = arith.addf %491, %502 : vector<4x16xf32>
    %c14_268 = arith.constant 14 : index
    %504 = memref.load %arg3[%c14_268] : memref<34xf32, #tpu.memory_space<smem>>
    %c1_269 = arith.constant 1 : index
    %c2_270 = arith.constant 2 : index
    %c1_271 = arith.constant 1 : index
    %505 = vector.load %arg10[%c1_269, %c2_270, %c1_271] : memref<2x6x18xf32, #tpu.memory_space<vmem>>, vector<1x4x16xf32>
    %506 = vector.shape_cast %505 : vector<1x4x16xf32> to vector<4x16xf32>
    %507 = vector.broadcast %504 : f32 to vector<4x16xf32>
    %508 = arith.mulf %507, %506 : vector<4x16xf32>
    %509 = arith.addf %497, %508 : vector<4x16xf32>
    %c8_272 = arith.constant 8 : index
    %510 = memref.load %arg3[%c8_272] : memref<34xf32, #tpu.memory_space<smem>>
    %c0_273 = arith.constant 0 : index
    %c2_274 = arith.constant 2 : index
    %c2_275 = arith.constant 2 : index
    %511 = vector.load %arg10[%c0_273, %c2_274, %c2_275] : memref<2x6x18xf32, #tpu.memory_space<vmem>>, vector<1x4x16xf32>
    %512 = vector.shape_cast %511 : vector<1x4x16xf32> to vector<4x16xf32>
    %513 = vector.broadcast %510 : f32 to vector<4x16xf32>
    %514 = arith.mulf %513, %512 : vector<4x16xf32>
    %515 = arith.addf %503, %514 : vector<4x16xf32>
    %c17_276 = arith.constant 17 : index
    %516 = memref.load %arg3[%c17_276] : memref<34xf32, #tpu.memory_space<smem>>
    %c1_277 = arith.constant 1 : index
    %c2_278 = arith.constant 2 : index
    %c2_279 = arith.constant 2 : index
    %517 = vector.load %arg10[%c1_277, %c2_278, %c2_279] : memref<2x6x18xf32, #tpu.memory_space<vmem>>, vector<1x4x16xf32>
    %518 = vector.shape_cast %517 : vector<1x4x16xf32> to vector<4x16xf32>
    %519 = vector.broadcast %516 : f32 to vector<4x16xf32>
    %520 = arith.mulf %519, %518 : vector<4x16xf32>
    %521 = arith.addf %509, %520 : vector<4x16xf32>
    %c18_280 = arith.constant 18 : index
    %522 = memref.load %arg3[%c18_280] : memref<34xf32, #tpu.memory_space<smem>>
    %523 = vector.broadcast %522 : f32 to vector<4x16xf32>
    %524 = arith.addf %515, %523 : vector<4x16xf32>
    %c19_281 = arith.constant 19 : index
    %525 = memref.load %arg3[%c19_281] : memref<34xf32, #tpu.memory_space<smem>>
    %526 = vector.broadcast %525 : f32 to vector<4x16xf32>
    %527 = arith.addf %521, %526 : vector<4x16xf32>
    %c20_282 = arith.constant 20 : index
    %528 = memref.load %arg3[%c20_282] : memref<34xf32, #tpu.memory_space<smem>>
    %529 = vector.broadcast %528 : f32 to vector<4x16xf32>
    %530 = arith.mulf %529, %524 : vector<4x16xf32>
    %c21_283 = arith.constant 21 : index
    %531 = memref.load %arg3[%c21_283] : memref<34xf32, #tpu.memory_space<smem>>
    %532 = vector.broadcast %531 : f32 to vector<4x16xf32>
    %533 = arith.mulf %532, %527 : vector<4x16xf32>
    %534 = arith.addf %530, %533 : vector<4x16xf32>
    %c24_284 = arith.constant 24 : index
    %535 = memref.load %arg3[%c24_284] : memref<34xf32, #tpu.memory_space<smem>>
    %536 = vector.broadcast %535 : f32 to vector<4x16xf32>
    %537 = arith.addf %534, %536 : vector<4x16xf32>
    %c22_285 = arith.constant 22 : index
    %538 = memref.load %arg3[%c22_285] : memref<34xf32, #tpu.memory_space<smem>>
    %539 = vector.broadcast %538 : f32 to vector<4x16xf32>
    %540 = arith.mulf %539, %524 : vector<4x16xf32>
    %c23_286 = arith.constant 23 : index
    %541 = memref.load %arg3[%c23_286] : memref<34xf32, #tpu.memory_space<smem>>
    %542 = vector.broadcast %541 : f32 to vector<4x16xf32>
    %543 = arith.mulf %542, %527 : vector<4x16xf32>
    %544 = arith.addf %540, %543 : vector<4x16xf32>
    %c25_287 = arith.constant 25 : index
    %545 = memref.load %arg3[%c25_287] : memref<34xf32, #tpu.memory_space<smem>>
    %546 = vector.broadcast %545 : f32 to vector<4x16xf32>
    %547 = arith.addf %544, %546 : vector<4x16xf32>
    %cst_288 = arith.constant dense<0.000000e+00> : vector<4xf32>
    %548 = vector.multi_reduction <add>, %537, %cst_288 [1] : vector<4x16xf32> to vector<4xf32>
    %549 = vector.shape_cast %548 : vector<4xf32> to vector<4x1xf32>
    %cst_289 = arith.constant dense<0.000000e+00> : vector<1xf32>
    %550 = vector.multi_reduction <add>, %549, %cst_289 [0] : vector<4x1xf32> to vector<1xf32>
    %551 = vector.shape_cast %550 : vector<1xf32> to vector<1x1xf32>
    %cst_290 = arith.constant 1.562500e-02 : f32
    %552 = vector.broadcast %cst_290 : f32 to vector<1x1xf32>
    %553 = arith.mulf %551, %552 : vector<1x1xf32>
    %554 = vector.broadcast %553 : vector<1x1xf32> to vector<4x16xf32>
    %555 = arith.subf %537, %554 : vector<4x16xf32>
    %556 = arith.mulf %555, %555 : vector<4x16xf32>
    %cst_291 = arith.constant dense<0.000000e+00> : vector<4xf32>
    %557 = vector.multi_reduction <add>, %556, %cst_291 [1] : vector<4x16xf32> to vector<4xf32>
    %558 = vector.shape_cast %557 : vector<4xf32> to vector<4x1xf32>
    %cst_292 = arith.constant dense<0.000000e+00> : vector<1xf32>
    %559 = vector.multi_reduction <add>, %558, %cst_292 [0] : vector<4x1xf32> to vector<1xf32>
    %560 = vector.shape_cast %559 : vector<1xf32> to vector<1x1xf32>
    %cst_293 = arith.constant 1.562500e-02 : f32
    %561 = vector.broadcast %cst_293 : f32 to vector<1x1xf32>
    %562 = arith.mulf %560, %561 : vector<1x1xf32>
    %cst_294 = arith.constant 9.99999974E-6 : f32
    %563 = vector.broadcast %cst_294 : f32 to vector<1x1xf32>
    %564 = arith.addf %562, %563 : vector<1x1xf32>
    %565 = math.rsqrt %564 : vector<1x1xf32>
    %c26_295 = arith.constant 26 : index
    %566 = memref.load %arg3[%c26_295] : memref<34xf32, #tpu.memory_space<smem>>
    %567 = vector.broadcast %566 : f32 to vector<1x1xf32>
    %568 = arith.mulf %565, %567 : vector<1x1xf32>
    %569 = vector.broadcast %568 : vector<1x1xf32> to vector<4x16xf32>
    %570 = arith.mulf %555, %569 : vector<4x16xf32>
    %c27_296 = arith.constant 27 : index
    %571 = memref.load %arg3[%c27_296] : memref<34xf32, #tpu.memory_space<smem>>
    %572 = vector.broadcast %571 : f32 to vector<4x16xf32>
    %573 = arith.addf %570, %572 : vector<4x16xf32>
    %c30_297 = arith.constant 30 : index
    %574 = memref.load %arg3[%c30_297] : memref<34xf32, #tpu.memory_space<smem>>
    %c29_298 = arith.constant 29 : index
    %575 = memref.load %arg3[%c29_298] : memref<34xf32, #tpu.memory_space<smem>>
    %cst_299 = arith.constant 9.99999974E-6 : f32
    %576 = arith.addf %575, %cst_299 : f32
    %577 = math.sqrt %576 : f32
    %578 = arith.divf %574, %577 : f32
    %c28_300 = arith.constant 28 : index
    %579 = memref.load %arg3[%c28_300] : memref<34xf32, #tpu.memory_space<smem>>
    %580 = vector.broadcast %579 : f32 to vector<4x16xf32>
    %581 = arith.subf %547, %580 : vector<4x16xf32>
    %582 = vector.broadcast %578 : f32 to vector<4x16xf32>
    %583 = arith.mulf %581, %582 : vector<4x16xf32>
    %c31_301 = arith.constant 31 : index
    %584 = memref.load %arg3[%c31_301] : memref<34xf32, #tpu.memory_space<smem>>
    %585 = vector.broadcast %584 : f32 to vector<4x16xf32>
    %586 = arith.addf %583, %585 : vector<4x16xf32>
    %c32_302 = arith.constant 32 : index
    %587 = memref.load %arg3[%c32_302] : memref<34xf32, #tpu.memory_space<smem>>
    %588 = vector.broadcast %587 : f32 to vector<4x16xf32>
    %589 = arith.mulf %588, %573 : vector<4x16xf32>
    %c33_303 = arith.constant 33 : index
    %590 = memref.load %arg3[%c33_303] : memref<34xf32, #tpu.memory_space<smem>>
    %591 = vector.broadcast %590 : f32 to vector<4x16xf32>
    %592 = arith.mulf %591, %586 : vector<4x16xf32>
    %593 = arith.addf %589, %592 : vector<4x16xf32>
    %594 = arith.negf %593 : vector<4x16xf32>
    %595 = math.exp %594 : vector<4x16xf32>
    %cst_304 = arith.constant 1.000000e+00 : f32
    %596 = vector.broadcast %cst_304 : f32 to vector<4x16xf32>
    %597 = arith.addf %596, %595 : vector<4x16xf32>
    %598 = arith.divf %596, %597 : vector<4x16xf32>
    %c0_305 = arith.constant 0 : index
    %c0_306 = arith.constant 0 : index
    %c0_307 = arith.constant 0 : index
    %c0_308 = arith.constant 0 : index
    %599 = vector.load %arg4[%c0_305, %c0_306, %c0_307, %c0_308] : memref<1x4x16x16xf32, #tpu.memory_space<vmem>>, vector<1x4x16x16xf32>
    %600 = vector.shape_cast %599 : vector<1x4x16x16xf32> to vector<4x16x16xf32>
    %601 = vector.shape_cast %208 : vector<16x16xf32> to vector<1x16x16xf32>
    %602 = vector.broadcast %601 : vector<1x16x16xf32> to vector<4x16x16xf32>
    %603 = arith.mulf %600, %602 : vector<4x16x16xf32>
    %c0_309 = arith.constant 0 : index
    %c0_310 = arith.constant 0 : index
    %c0_311 = arith.constant 0 : index
    %c0_312 = arith.constant 0 : index
    %604 = vector.load %arg5[%c0_309, %c0_310, %c0_311, %c0_312] : memref<1x4x16x16xf32, #tpu.memory_space<vmem>>, vector<1x4x16x16xf32>
    %605 = vector.shape_cast %604 : vector<1x4x16x16xf32> to vector<4x16x16xf32>
    %606 = vector.shape_cast %603 : vector<4x16x16xf32> to vector<1x4x16x16xf32>
    tpu.vector_store %arg5[%c0_309, %c0_310, %c0_311, %c0_312], %606 {strides = array<i32>} : memref<1x4x16x16xf32, #tpu.memory_space<vmem>>, vector<1x4x16x16xf32>,
    %c0_313 = arith.constant 0 : index
    %c0_314 = arith.constant 0 : index
    %c0_315 = arith.constant 0 : index
    %c0_316 = arith.constant 0 : index
    %607 = vector.load %arg4[%c0_313, %c0_314, %c0_315, %c0_316] : memref<1x4x16x16xf32, #tpu.memory_space<vmem>>, vector<1x4x16x16xf32>
    %608 = vector.shape_cast %607 : vector<1x4x16x16xf32> to vector<4x16x16xf32>
    %609 = vector.shape_cast %403 : vector<4x16xf32> to vector<4x1x16xf32>
    %610 = vector.broadcast %609 : vector<4x1x16xf32> to vector<4x16x16xf32>
    %611 = arith.mulf %608, %610 : vector<4x16x16xf32>
    %c0_317 = arith.constant 0 : index
    %c0_318 = arith.constant 0 : index
    %c0_319 = arith.constant 0 : index
    %c0_320 = arith.constant 0 : index
    %612 = vector.load %arg6[%c0_317, %c0_318, %c0_319, %c0_320] : memref<1x4x16x16xf32, #tpu.memory_space<vmem>>, vector<1x4x16x16xf32>
    %613 = vector.shape_cast %612 : vector<1x4x16x16xf32> to vector<4x16x16xf32>
    %614 = vector.shape_cast %611 : vector<4x16x16xf32> to vector<1x4x16x16xf32>
    tpu.vector_store %arg6[%c0_317, %c0_318, %c0_319, %c0_320], %614 {strides = array<i32>} : memref<1x4x16x16xf32, #tpu.memory_space<vmem>>, vector<1x4x16x16xf32>,
    %c0_321 = arith.constant 0 : index
    %c0_322 = arith.constant 0 : index
    %c0_323 = arith.constant 0 : index
    %c0_324 = arith.constant 0 : index
    %615 = vector.load %arg4[%c0_321, %c0_322, %c0_323, %c0_324] : memref<1x4x16x16xf32, #tpu.memory_space<vmem>>, vector<1x4x16x16xf32>
    %616 = vector.shape_cast %615 : vector<1x4x16x16xf32> to vector<4x16x16xf32>
    %617 = vector.shape_cast %598 : vector<4x16xf32> to vector<4x16x1xf32>
    %618 = vector.broadcast %617 : vector<4x16x1xf32> to vector<4x16x16xf32>
    %619 = arith.mulf %616, %618 : vector<4x16x16xf32>
    %c0_325 = arith.constant 0 : index
    %c0_326 = arith.constant 0 : index
    %c0_327 = arith.constant 0 : index
    %c0_328 = arith.constant 0 : index
    %620 = vector.load %arg7[%c0_325, %c0_326, %c0_327, %c0_328] : memref<1x4x16x16xf32, #tpu.memory_space<vmem>>, vector<1x4x16x16xf32>
    %621 = vector.shape_cast %620 : vector<1x4x16x16xf32> to vector<4x16x16xf32>
    %622 = vector.shape_cast %619 : vector<4x16x16xf32> to vector<1x4x16x16xf32>
    tpu.vector_store %arg7[%c0_325, %c0_326, %c0_327, %c0_328], %622 {strides = array<i32>} : memref<1x4x16x16xf32, #tpu.memory_space<vmem>>, vector<1x4x16x16xf32>,
    return
  }
  func.func @transform_0(%arg0: i32) -> i32 {
    %c0_i32 = arith.constant 0 : i32
    %c0_i32_0 = arith.constant 0 : i32
    return %c0_i32 : i32
  }
  func.func @transform_1(%arg0: i32) -> i32 {
    %c0_i32 = arith.constant 0 : i32
    %c0_i32_0 = arith.constant 0 : i32
    return %c0_i32 : i32
  }
  func.func @transform_2(%arg0: i32) -> i32 {
    %c0_i32 = arith.constant 0 : i32
    %c0_i32_0 = arith.constant 0 : i32
    return %c0_i32 : i32
  }
  func.func @transform_3(%arg0: i32) -> (i32, i32, i32, i32) {
    %c0_i32 = arith.constant 0 : i32
    %c0_i32_0 = arith.constant 0 : i32
    %c0_i32_1 = arith.constant 0 : i32
    %c0_i32_2 = arith.constant 0 : i32
    return %arg0, %c0_i32, %c0_i32_0, %c0_i32_1 : i32, i32, i32, i32
  }
  func.func @transform_4(%arg0: i32) -> (i32, i32, i32, i32) {
    %c0_i32 = arith.constant 0 : i32
    %c0_i32_0 = arith.constant 0 : i32
    %c0_i32_1 = arith.constant 0 : i32
    %c0_i32_2 = arith.constant 0 : i32
    return %arg0, %c0_i32, %c0_i32_0, %c0_i32_1 : i32, i32, i32, i32
  }
  func.func @transform_5(%arg0: i32) -> (i32, i32, i32, i32) {
    %c0_i32 = arith.constant 0 : i32
    %c0_i32_0 = arith.constant 0 : i32
    %c0_i32_1 = arith.constant 0 : i32
    %c0_i32_2 = arith.constant 0 : i32
    return %arg0, %c0_i32, %c0_i32_0, %c0_i32_1 : i32, i32, i32, i32
  }
  func.func @transform_6(%arg0: i32) -> (i32, i32, i32, i32) {
    %c0_i32 = arith.constant 0 : i32
    %c0_i32_0 = arith.constant 0 : i32
    %c0_i32_1 = arith.constant 0 : i32
    %c0_i32_2 = arith.constant 0 : i32
    return %arg0, %c0_i32, %c0_i32_0, %c0_i32_1 : i32, i32, i32, i32
  }
}

</mosaic_0001>

<llo_original>
// kernel: tpu_custom_call.1
$region0: #{tpu_custom_call.1}
  #allocation0 [shape = 'u32[]', space=smem, size = 0x4, offset = 0x4, fixed_abs, tag = 'smem constant byte address 0x4 - core index']
  #allocation1 [shape = 'u32[144,128]{1,0:T(1,128)}', space=vmem, size = 0x12000, scoped, tag = 'internal scratch']
  #allocation2 [shape = 'f32[2,18,18]{2,1,0:T(8,128)}', space=vmem, size = 0x6000, scoped, tag = 'scratch operand']
  #allocation3 [shape = 'f32[2,6,18]{2,1,0:T(8,128)}', space=vmem, size = 0x2000, scoped, tag = 'scratch operand']
  #allocation4 [shape = 'f32[2,6,18]{2,1,0:T(8,128)}', space=vmem, size = 0x2000, scoped, tag = 'scratch operand']
  %s0 = inlined_call_operand.hbm [shape: f32[34], index: 0, kind: input, shape index: {}]
  %s1 = inlined_call_operand.vmem [shape: f32[34], index: 1, kind: input, shape index: {}]
  %s2 = inlined_call_operand.vmem [shape: f32[34], index: 2, kind: input, shape index: {}]
  %s3 = inlined_call_operand.hbm [shape: f32[2,4,16,16], index: 3, kind: input, shape index: {}]
  %s4 = inlined_call_operand.hbm [shape: f32[2,4,16,16], index: 4, kind: output, shape index: {0}]
  %s5 = inlined_call_operand.hbm [shape: f32[2,4,16,16], index: 5, kind: output, shape index: {1}]
  %s6 = inlined_call_operand.hbm [shape: f32[2,4,16,16], index: 6, kind: output, shape index: {2}]
  %7 = xla_tuple %s4, %s5, %s6
  %s8 = sld [smem:[#allocation0]]
  $region81: #{tpu_custom_call.1} parent=0
    _
  %s10 = ssub.s32 1, %s8
  %s11 = scalar_select 0, %s10, %s8
  $region1: #{tpu_custom_call.1} parent=0
    #allocation5 [shape = 'u8[512]{0}', space=smem, size = 0x200, scoped, tag = 'input window, operand 0, single buffered']
    #allocation6 [shape = 's32[2]{0}', space=sflag, size = 0x8, scoped, tag = 'scoped memory for tpu_custom_call.1']
    #allocation7 [shape = 's32[2]{0}', space=sflag, size = 0x8, scoped, tag = 'scoped memory for tpu_custom_call.1']
    #allocation8 [shape = 's32[2]{0}', space=sflag, size = 0x8, scoped, tag = 'scoped memory for tpu_custom_call.1']
    #allocation9 [shape = 's32[2]{0}', space=sflag, size = 0x8, scoped, tag = 'scoped memory for tpu_custom_call.1']
    #allocation10 [shape = 'u8[512]{0}', space=smem, size = 0x200, scoped, tag = 'input window, operand 1, single buffered']
    #allocation11 [shape = 'u8[512]{0}', space=smem, size = 0x200, scoped, tag = 'input window, operand 2, single buffered']
    #allocation12 [shape = 's32[1]{0}', space=sflag, size = 0x4, scoped, tag = 'scoped memory for tpu_custom_call.1']
    #allocation13 [shape = 'u8[65536]{0}', space=vmem, size = 0x10000, scoped, tag = 'input window, operand 3']
    #allocation14 [shape = 'u8[65536]{0}', space=vmem, size = 0x10000, scoped, tag = 'output window, operand 0']
    #allocation15 [shape = 'u8[65536]{0}', space=vmem, size = 0x10000, scoped, tag = 'output window, operand 1']
    #allocation16 [shape = 's32[2]{0}', space=sflag, size = 0x8, scoped, tag = 'scoped memory for tpu_custom_call.1']
    #allocation17 [shape = 'u8[65536]{0}', space=vmem, size = 0x10000, scoped, tag = 'output window, operand 2']
    %12 = vsyncpa [#allocation8], 0
    %13 = vsyncpa [#allocation9], 0
    %14 = vsyncpa [#allocation12], 0
    %15 = vsyncpa [#allocation6], 0
    %s16 = scalar_lea.sflag [#allocation6], 1
    %17 = vsyncpa %s16, 0
    %18 = vsyncpa [#allocation7], 0
    %s19 = scalar_lea.sflag [#allocation7], 1
    %20 = vsyncpa %s19, 0
    %21 = vsyncpa [#allocation16], 0
    %s22 = scalar_lea.sflag [#allocation16], 1
    %23 = vsyncpa %s22, 0
    loop: start=0, step=1, limit=4
    $region2: #{tpu_custom_call.1} parent=1 // loop_pre_header
      _
    $region3: #{tpu_custom_call.1} parent=1 // loop_header
      %s25 = sphi 0, %s29
      %p26 = scmp.ge.s32.totalorder %s25, 4
      %s33 = sphi 0, %s33
      %s35 = sphi 0, %s33
      %s36 = sphi 0, %s35
      %s50 = sphi 0, %s36
      %s54 = sphi 0, %s54
      %s56 = sphi 0, %s54
      %s57 = sphi 0, %s56
      %s71 = sphi 0, %s57
      %s75 = sphi 0, %s75
      %s77 = sphi 0, %s75
      %s78 = sphi 0, %s77
      %s92 = sphi 0, %s78
      %s98 = sphi 0, %s100
      %s101 = sphi 0, %s98
      %s102 = sphi 0, %s101
      %s118 = sphi 0, %s102
      %s124 = sphi 0, %s126
      %s127 = sphi 0, %s124
      %s128 = sphi 0, %s127
      %s144 = sphi 0, %s128
      %s150 = sphi 0, %s152
      %s153 = sphi 0, %s150
      %s154 = sphi 0, %s153
      %s170 = sphi 0, %s154
      %s176 = sphi 0, %s178
      %s179 = sphi 0, %s176
      %s180 = sphi 0, %s179
      %s196 = sphi 0, %s180
    $region4: #{tpu_custom_call.1} parent=1 // loop_header_branch
      %28 = sbr.rel (%p26) target = $region8
    $region5: #{tpu_custom_call.1} parent=1 // loop_body
      %s30 = ssub.s32 %s25, 1
      %s31 = ssub.s32 %s25, 2
      %s32 = sadd.s32 %s25, 1
      %s34 = sadd.s32 %s33, 1
      %p37 = scmp.eq.s32.totalorder %s25, 1
      %p38 = scmp.ne.s32.totalorder %s33, %s35
      %p39 = scmp.eq.s32.totalorder %s25, 0
      %p40 = por %p38, %p39
      %p41 = scmp.ne.s32.totalorder %s33, %s35
      %p42 = scmp.eq.s32.totalorder %s30, 1
      %p43 = por %p41, %p42
      %p44 = scmp.ne.s32.totalorder %s35, %s36
      %p45 = scmp.eq.s32.totalorder %s30, 0
      %p46 = por %p44, %p45
      %p47 = scmp.ne.s32.totalorder %s35, %s36
      %p48 = scmp.eq.s32.totalorder %s31, 1
      %p49 = por %p47, %p48
      %p51 = scmp.ne.s32.totalorder %s36, %s50
      %p52 = scmp.eq.s32.totalorder %s31, 0
      %p53 = por %p51, %p52
      %s55 = sadd.s32 %s54, 1
      %p58 = scmp.eq.s32.totalorder %s25, 1
      %p59 = scmp.ne.s32.totalorder %s54, %s56
      %p60 = scmp.eq.s32.totalorder %s25, 0
      %p61 = por %p59, %p60
      %p62 = scmp.ne.s32.totalorder %s54, %s56
      %p63 = scmp.eq.s32.totalorder %s30, 1
      %p64 = por %p62, %p63
      %p65 = scmp.ne.s32.totalorder %s56, %s57
      %p66 = scmp.eq.s32.totalorder %s30, 0
      %p67 = por %p65, %p66
      %p68 = scmp.ne.s32.totalorder %s56, %s57
      %p69 = scmp.eq.s32.totalorder %s31, 1
      %p70 = por %p68, %p69
      %p72 = scmp.ne.s32.totalorder %s57, %s71
      %p73 = scmp.eq.s32.totalorder %s31, 0
      %p74 = por %p72, %p73
      %s76 = sadd.s32 %s75, 1
      %p79 = scmp.eq.s32.totalorder %s25, 1
      %p80 = scmp.ne.s32.totalorder %s75, %s77
      %p81 = scmp.eq.s32.totalorder %s25, 0
      %p82 = por %p80, %p81
      %p83 = scmp.ne.s32.totalorder %s75, %s77
      %p84 = scmp.eq.s32.totalorder %s30, 1
      %p85 = por %p83, %p84
      %p86 = scmp.ne.s32.totalorder %s77, %s78
      %p87 = scmp.eq.s32.totalorder %s30, 0
      %p88 = por %p86, %p87
      %p89 = scmp.ne.s32.totalorder %s77, %s78
      %p90 = scmp.eq.s32.totalorder %s31, 1
      %p91 = por %p89, %p90
      %p93 = scmp.ne.s32.totalorder %s78, %s92
      %p94 = scmp.eq.s32.totalorder %s31, 0
      %p95 = por %p93, %p94
      %s96 = ssub.s32 %s25, %s32
      %p97 = scmp.eq.s32.totalorder %s96, 0
      %s99 = sadd.s32 %s98, 1
      %s100 = scalar_select %p97, %s98, %s99
      %p103 = pneg %p97
      %p104 = scmp.eq.s32.totalorder %s25, 1
      %p105 = por %p103, %p104
      %p106 = scmp.ne.s32.totalorder %s98, %s101
      %p107 = scmp.eq.s32.totalorder %s25, 0
      %p108 = por %p106, %p107
      %p109 = scmp.ne.s32.totalorder %s98, %s101
      %p110 = scmp.eq.s32.totalorder %s30, 1
      %p111 = por %p109, %p110
      %p112 = scmp.ne.s32.totalorder %s101, %s102
      %p113 = scmp.eq.s32.totalorder %s30, 0
      %p114 = por %p112, %p113
      %p115 = scmp.ne.s32.totalorder %s101, %s102
      %p116 = scmp.eq.s32.totalorder %s31, 1
      %p117 = por %p115, %p116
      %p119 = scmp.ne.s32.totalorder %s102, %s118
      %p120 = scmp.eq.s32.totalorder %s31, 0
      %p121 = por %p119, %p120
      %s122 = ssub.s32 %s25, %s32
      %p123 = scmp.eq.s32.totalorder %s122, 0
      %s125 = sadd.s32 %s124, 1
      %s126 = scalar_select %p123, %s124, %s125
      %p129 = pneg %p123
      %p130 = scmp.eq.s32.totalorder %s25, 1
      %p131 = por %p129, %p130
      %p132 = scmp.ne.s32.totalorder %s124, %s127
      %p133 = scmp.eq.s32.totalorder %s25, 0
      %p134 = por %p132, %p133
      %p135 = scmp.ne.s32.totalorder %s124, %s127
      %p136 = scmp.eq.s32.totalorder %s30, 1
      %p137 = por %p135, %p136
      %p138 = scmp.ne.s32.totalorder %s127, %s128
      %p139 = scmp.eq.s32.totalorder %s30, 0
      %p140 = por %p138, %p139
      %p141 = scmp.ne.s32.totalorder %s127, %s128
      %p142 = scmp.eq.s32.totalorder %s31, 1
      %p143 = por %p141, %p142
      %p145 = scmp.ne.s32.totalorder %s128, %s144
      %p146 = scmp.eq.s32.totalorder %s31, 0
      %p147 = por %p145, %p146
      %s148 = ssub.s32 %s25, %s32
      %p149 = scmp.eq.s32.totalorder %s148, 0
      %s151 = sadd.s32 %s150, 1
      %s152 = scalar_select %p149, %s150, %s151
      %p155 = pneg %p149
      %p156 = scmp.eq.s32.totalorder %s25, 1
      %p157 = por %p155, %p156
      %p158 = scmp.ne.s32.totalorder %s150, %s153
      %p159 = scmp.eq.s32.totalorder %s25, 0
      %p160 = por %p158, %p159
      %p161 = scmp.ne.s32.totalorder %s150, %s153
      %p162 = scmp.eq.s32.totalorder %s30, 1
      %p163 = por %p161, %p162
      %p164 = scmp.ne.s32.totalorder %s153, %s154
      %p165 = scmp.eq.s32.totalorder %s30, 0
      %p166 = por %p164, %p165
      %p167 = scmp.ne.s32.totalorder %s153, %s154
      %p168 = scmp.eq.s32.totalorder %s31, 1
      %p169 = por %p167, %p168
      %p171 = scmp.ne.s32.totalorder %s154, %s170
      %p172 = scmp.eq.s32.totalorder %s31, 0
      %p173 = por %p171, %p172
      %s174 = ssub.s32 %s25, %s32
      %p175 = scmp.eq.s32.totalorder %s174, 0
      %s177 = sadd.s32 %s176, 1
      %s178 = scalar_select %p175, %s176, %s177
      %p181 = pneg %p175
      %p182 = scmp.eq.s32.totalorder %s25, 1
      %p183 = por %p181, %p182
      %p184 = scmp.ne.s32.totalorder %s176, %s179
      %p185 = scmp.eq.s32.totalorder %s25, 0
      %p186 = por %p184, %p185
      %p187 = scmp.ne.s32.totalorder %s176, %s179
      %p188 = scmp.eq.s32.totalorder %s30, 1
      %p189 = por %p187, %p188
      %p190 = scmp.ne.s32.totalorder %s179, %s180
      %p191 = scmp.eq.s32.totalorder %s30, 0
      %p192 = por %p190, %p191
      %p193 = scmp.ne.s32.totalorder %s179, %s180
      %p194 = scmp.eq.s32.totalorder %s31, 1
      %p195 = por %p193, %p194
      %p197 = scmp.ne.s32.totalorder %s180, %s196
      %p198 = scmp.eq.s32.totalorder %s31, 0
      %p199 = por %p197, %p198
      %p200 = scmp.le.s32.totalorder 1, %s25
      %p201 = scmp.lt.s32.totalorder %s25, 3
      %p202 = pnand %p200, %p201
      %p203 = pneg %p202
      // Predicated region
      $region9: #{tpu_custom_call.1} parent=5 // pred_check
        _
      $region10: #{tpu_custom_call.1} parent=5 // pred_check_branch
        %205 = sbr.rel (%p202) target = $region12
      $region11: #{tpu_custom_call.1} parent=5 // pred_region
        %s206 = ssub.s32 %s25, 1
        // Predicated region
        $region13: #{tpu_custom_call.1} parent=11 // pred_check
          %p207 = pneg %p46
        $region14: #{tpu_custom_call.1} parent=11 // pred_check_branch
          %209 = sbr.rel (%p207) target = $region16
        $region15: #{tpu_custom_call.1} parent=11 // pred_region
          %s211 = ssub.s32 16, 16
          %212 = vsyncadd [#allocation8], %s211
          %215 = dma.hbm_to_smem %s0, 16, [#allocation5], [#allocation8]
        $region16: #{tpu_custom_call.1} parent=11 // pred_fallthru
          _
        // Predicated region
        $region17: #{tpu_custom_call.1} parent=11 // pred_check
          %p216 = pneg %p67
        $region18: #{tpu_custom_call.1} parent=11 // pred_check_branch
          %218 = sbr.rel (%p216) target = $region20
        $region19: #{tpu_custom_call.1} parent=11 // pred_region
          %s220 = ssub.s32 16, 16
          %221 = vsyncadd [#allocation9], %s220
          %s223 = sshll.u32 %s1, 4
          %s224 = int_to_ptr.vmem [resolvable:$true] %s223
          %226 = dma.vmem_to_smem %s224, 16, [#allocation10], [#allocation9]
        $region20: #{tpu_custom_call.1} parent=11 // pred_fallthru
          _
        // Predicated region
        $region21: #{tpu_custom_call.1} parent=11 // pred_check
          %p227 = pneg %p88
        $region22: #{tpu_custom_call.1} parent=11 // pred_check_branch
          %229 = sbr.rel (%p227) target = $region24
        $region23: #{tpu_custom_call.1} parent=11 // pred_region
          %s231 = ssub.s32 16, 16
          %232 = vsyncadd [#allocation12], %s231
          %s234 = sshll.u32 %s2, 4
          %s235 = int_to_ptr.vmem [resolvable:$true] %s234
          %237 = dma.vmem_to_smem %s235, 16, [#allocation11], [#allocation12]
        $region24: #{tpu_custom_call.1} parent=11 // pred_fallthru
          _
      $region12: #{tpu_custom_call.1} parent=5 // pred_fallthru
        _
      %p238 = scmp.lt.s32.totalorder %s25, 2
      // Predicated region
      $region25: #{tpu_custom_call.1} parent=5 // pred_check
        %p239 = pneg %p238
      $region26: #{tpu_custom_call.1} parent=5 // pred_check_branch
        %241 = sbr.rel (%p239) target = $region28
      $region27: #{tpu_custom_call.1} parent=5 // pred_region
        // Predicated region
        $region29: #{tpu_custom_call.1} parent=27 // pred_check
          %p242 = pneg %p108
        $region30: #{tpu_custom_call.1} parent=27 // pred_check_branch
          %244 = sbr.rel (%p242) target = $region32
        $region31: #{tpu_custom_call.1} parent=27 // pred_region
          %s245 = sand.u32 %s98, 1
          %s246 = scalar_lea.sflag [#allocation6], %s245
          %s247 = sand.u32 %s98, 1
          %s248 = smul.addr %s247, 64
          %s249 = scalar_lea.vmem [#allocation13], %s248
          %s251 = ssub.s32 1024, 1024
          %252 = vsyncadd %s246, %s251
          %s253 = smul.addr %s25, 8
          %s254 = smul.addr %s253, 128
          %s255 = scalar_lea.hbm %s3, %s254
          %s256 = sshll.u32 %s249, 4
          %s257 = int_to_ptr.vmem [resolvable:$true] %s256
          %262 = dma.hbm_to_vmem [thread:$0]  %s255, 1024, %s257, %s246, 128, 128, 8
        $region32: #{tpu_custom_call.1} parent=27 // pred_fallthru
          _
      $region28: #{tpu_custom_call.1} parent=5 // pred_fallthru
        _
      %p263 = scmp.le.s32.totalorder 1, %s25
      %p264 = scmp.lt.s32.totalorder %s25, 3
      %p265 = pnand %p263, %p264
      %p266 = pneg %p265
      // Predicated region
      $region33: #{tpu_custom_call.1} parent=5 // pred_check
        _
      $region34: #{tpu_custom_call.1} parent=5 // pred_check_branch
        %268 = sbr.rel (%p265) target = $region36
      $region35: #{tpu_custom_call.1} parent=5 // pred_region
        %s269 = ssub.s32 %s25, 1
        // Predicated region
        $region37: #{tpu_custom_call.1} parent=35 // pred_check
          %p270 = pneg %p46
        $region38: #{tpu_custom_call.1} parent=35 // pred_check_branch
          %272 = sbr.rel (%p270) target = $region40
        $region39: #{tpu_custom_call.1} parent=35 // pred_region
          %273 = dma.done [#allocation8], 16
        $region40: #{tpu_custom_call.1} parent=35 // pred_fallthru
          _
        // Predicated region
        $region41: #{tpu_custom_call.1} parent=35 // pred_check
          %p274 = pneg %p67
        $region42: #{tpu_custom_call.1} parent=35 // pred_check_branch
          %276 = sbr.rel (%p274) target = $region44
        $region43: #{tpu_custom_call.1} parent=35 // pred_region
          %277 = dma.done [#allocation9], 16
        $region44: #{tpu_custom_call.1} parent=35 // pred_fallthru
          _
        // Predicated region
        $region45: #{tpu_custom_call.1} parent=35 // pred_check
          %p278 = pneg %p88
        $region46: #{tpu_custom_call.1} parent=35 // pred_check_branch
          %280 = sbr.rel (%p278) target = $region48
        $region47: #{tpu_custom_call.1} parent=35 // pred_region
          %281 = dma.done [#allocation12], 16
        $region48: #{tpu_custom_call.1} parent=35 // pred_fallthru
          _
        %s282 = sand.u32 %s101, 1
        %s283 = scalar_lea.sflag [#allocation6], %s282
        %s284 = sand.u32 %s101, 1
        %s285 = smul.addr %s284, 64
        %s286 = scalar_lea.vmem [#allocation13], %s285
        // Predicated region
        $region49: #{tpu_custom_call.1} parent=35 // pred_check
          %p287 = pneg %p114
        $region50: #{tpu_custom_call.1} parent=35 // pred_check_branch
          %289 = sbr.rel (%p287) target = $region52
        $region51: #{tpu_custom_call.1} parent=35 // pred_region
          %290 = dma.done %s283, 1024
        $region52: #{tpu_custom_call.1} parent=35 // pred_fallthru
          _
        %291 = sfence
        %p292 = pneg %p46
        %p293 = pneg %p43
        %p294 = pneg %p67
        %p295 = pneg %p64
        %p296 = pneg %p88
        %p297 = pneg %p85
        %s298 = sand.u32 %s101, 1
        %s299 = scalar_lea.sflag [#allocation6], %s298
        %s300 = sand.u32 %s101, 1
        %s301 = smul.addr %s300, 64
        %s302 = scalar_lea.vmem [#allocation13], %s301
        %p303 = pneg %p114
        %p304 = pneg %p111
        %p305 = pneg %p140
        %p306 = pneg %p137
        %s307 = sand.u32 %s127, 1
        %s308 = scalar_lea.sflag [#allocation7], %s307
        %s309 = sand.u32 %s127, 1
        %s310 = smul.addr %s309, 64
        %s311 = scalar_lea.vmem [#allocation14], %s310
        %p312 = pneg %p166
        %p313 = pneg %p163
        %s314 = sand.u32 %s30, 1
        %s315 = scalar_lea.sflag [#allocation16], %s314
        %s316 = sand.u32 %s153, 1
        %s317 = smul.addr %s316, 64
        %s318 = scalar_lea.vmem [#allocation15], %s317
        %p319 = pneg %p192
        %p320 = pneg %p189
        %s321 = sand.u32 %s30, 1
        %s322 = scalar_lea.sflag [#allocation16], %s321
        %s323 = sand.u32 %s179, 1
        %s324 = smul.addr %s323, 64
        %s325 = scalar_lea.vmem [#allocation17], %s324
        %v326 = vld [vmem:[%s286] sm:$0xff]
        %v327 = vld [vmem:[%s286 + $0x8] sm:$0xff]
        %v328 = vld [vmem:[%s286 + $0x10] sm:$0xff]
        %v329 = vld [vmem:[%s286 + $0x18] sm:$0xff]
        %v330 = vld [vmem:[%s286 + $0x20] sm:$0xff]
        %v331 = vld [vmem:[%s286 + $0x28] sm:$0xff]
        %v332 = vld [vmem:[%s286 + $0x30] sm:$0xff]
        %v333 = vld [vmem:[%s286 + $0x38] sm:$0xff]
        %vm334 = vcmask 130048
        %v335 = vsel %vm334, %v326, -inf
        %v336 = vsel %vm334, %v328, -inf
        %v337 = vsel %vm334, %v330, -inf
        %v338 = vmax.f32 %v335, %v337
        %v339 = vsel %vm334, %v332, -inf
        %v340 = vmax.f32 %v336, %v339
        %v341 = vmax.f32 %v338, %v340
        %v342 = vsel %vm334, %v327, -inf
        %v343 = vsel %vm334, %v329, -inf
        %v344 = vsel %vm334, %v331, -inf
        %v345 = vmax.f32 %v342, %v344
        %v346 = vsel %vm334, %v333, -inf
        %v347 = vmax.f32 %v343, %v346
        %v348 = vmax.f32 %v345, %v347
        %v349 = vsel %vm334, %v326, 0.0
        %v350 = vsel %vm334, %v328, 0.0
        %v351 = vadd.f32 %v349, %v350
        %v352 = vsel %vm334, %v330, 0.0
        %v353 = vadd.f32 %v351, %v352
        %v354 = vsel %vm334, %v332, 0.0
        %v355 = vadd.f32 %v353, %v354
        %v356 = vsel %vm334, %v327, 0.0
        %v357 = vsel %vm334, %v329, 0.0
        %v358 = vadd.f32 %v356, %v357
        %v359 = vsel %vm334, %v331, 0.0
        %v360 = vadd.f32 %v358, %v359
        %v361 = vsel %vm334, %v333, 0.0
        %v362 = vadd.f32 %v360, %v361
        %v363 = vmul.f32 %v355, 0.25
        %v364 = vmul.f32 %v362, 0.25
        %v365 = vmax.f32 %v335, %v342
        %v366 = vrot.slane %v365, 4
        %v367 = vmax.f32 %v365, %v366
        %v368 = vrot.slane %v367, 2
        %v369 = vmax.f32 %v367, %v368
        %v370 = vrot.slane %v369, 1
        %v371 = vmax.f32 %v369, %v370
        %v372 = vmax.f32 %v336, %v343
        %v373 = vrot.slane %v372, 4
        %v374 = vmax.f32 %v372, %v373
        %v375 = vrot.slane %v374, 2
        %v376 = vmax.f32 %v374, %v375
        %v377 = vrot.slane %v376, 1
        %v378 = vmax.f32 %v376, %v377
        %v379 = vmax.f32 %v337, %v344
        %v380 = vrot.slane %v379, 4
        %v381 = vmax.f32 %v379, %v380
        %v382 = vrot.slane %v381, 2
        %v383 = vmax.f32 %v381, %v382
        %v384 = vrot.slane %v383, 1
        %v385 = vmax.f32 %v383, %v384
        %v386 = vmax.f32 %v339, %v346
        %v387 = vrot.slane %v386, 4
        %v388 = vmax.f32 %v386, %v387
        %v389 = vrot.slane %v388, 2
        %v390 = vmax.f32 %v388, %v389
        %v391 = vrot.slane %v390, 1
        %v392 = vmax.f32 %v390, %v391
        %v393 = vadd.f32 %v349, %v356
        %v394 = vrot.slane %v393, 4
        %v395 = vadd.f32 %v393, %v394
        %v396 = vrot.slane %v395, 2
        %v397 = vadd.f32 %v395, %v396
        %v398 = vrot.slane %v397, 1
        %v399 = vadd.f32 %v397, %v398
        %v400 = vadd.f32 %v350, %v357
        %v401 = vrot.slane %v400, 4
        %v402 = vadd.f32 %v400, %v401
        %v403 = vrot.slane %v402, 2
        %v404 = vadd.f32 %v402, %v403
        %v405 = vrot.slane %v404, 1
        %v406 = vadd.f32 %v404, %v405
        %v407 = vadd.f32 %v352, %v359
        %v408 = vrot.slane %v407, 4
        %v409 = vadd.f32 %v407, %v408
        %v410 = vrot.slane %v409, 2
        %v411 = vadd.f32 %v409, %v410
        %v412 = vrot.slane %v411, 1
        %v413 = vadd.f32 %v411, %v412
        %v414 = vadd.f32 %v354, %v361
        %v415 = vrot.slane %v414, 4
        %v416 = vadd.f32 %v414, %v415
        %v417 = vrot.slane %v416, 2
        %v418 = vadd.f32 %v416, %v417
        %v419 = vrot.slane %v418, 1
        %v420 = vadd.f32 %v418, %v419
        %v421 = vmul.f32 %v399, 0.0625
        %v422 = vmul.f32 %v406, 0.0625
        %v423 = vmul.f32 %v413, 0.0625
        %v424 = vmul.f32 %v420, 0.0625
        %425 = vmax.xlane.f32.xlu0 %v335
        %v426 = vpop.xlane.xlu0 %425
        %427 = vmax.xlane.f32.xlu0 %v342
        %v428 = vpop.xlane.xlu0 %427
        %429 = vmax.xlane.f32.xlu0 %v336
        %v430 = vpop.xlane.xlu0 %429
        %431 = vmax.xlane.f32.xlu0 %v343
        %v432 = vpop.xlane.xlu0 %431
        %433 = vmax.xlane.f32.xlu0 %v337
        %v434 = vpop.xlane.xlu0 %433
        %435 = vmax.xlane.f32.xlu0 %v344
        %v436 = vpop.xlane.xlu0 %435
        %437 = vmax.xlane.f32.xlu0 %v339
        %v438 = vpop.xlane.xlu0 %437
        %439 = vmax.xlane.f32.xlu0 %v346
        %v440 = vpop.xlane.xlu0 %439
        %441 = vadd.xlane.f32.xlu0 %v349
        %v442 = vpop.xlane.xlu0 %441
        %443 = vadd.xlane.f32.xlu0 %v356
        %v444 = vpop.xlane.xlu0 %443
        %445 = vadd.xlane.f32.xlu0 %v350
        %v446 = vpop.xlane.xlu0 %445
        %447 = vadd.xlane.f32.xlu0 %v357
        %v448 = vpop.xlane.xlu0 %447
        %449 = vadd.xlane.f32.xlu0 %v352
        %v450 = vpop.xlane.xlu0 %449
        %451 = vadd.xlane.f32.xlu0 %v359
        %v452 = vpop.xlane.xlu0 %451
        %453 = vadd.xlane.f32.xlu0 %v354
        %v454 = vpop.xlane.xlu0 %453
        %455 = vadd.xlane.f32.xlu0 %v361
        %v456 = vpop.xlane.xlu0 %455
        %v457 = vmul.f32 %v442, 0.0625
        %v458 = vmul.f32 %v444, 0.0625
        %v459 = vmul.f32 %v446, 0.0625
        %v460 = vmul.f32 %v448, 0.0625
        %v461 = vmul.f32 %v450, 0.0625
        %v462 = vmul.f32 %v452, 0.0625
        %v463 = vmul.f32 %v454, 0.0625
        %v464 = vmul.f32 %v456, 0.0625
        %vm465 = vcmask 146432
        %466 = vst.msk [vmem:[#allocation2] sm:$0xff] %vm465, 0.0
        %467 = vst.msk [vmem:[#allocation2 + $0x8] sm:$0xff] %vm465, 0.0
        %vm468 = vcmask 140288
        %469 = vst.msk [vmem:[#allocation2 + $0x10] sm:$0x3] %vm468, 0.0
        %470 = vst.msk [vmem:[#allocation2 + $0x18] sm:$0xff] %vm465, 0.0
        %471 = vst.msk [vmem:[#allocation2 + $0x20] sm:$0xff] %vm465, 0.0
        %472 = vst.msk [vmem:[#allocation2 + $0x28] sm:$0x3] %vm468, 0.0
        %475 = vrot.lane.b32.xlu0 %v341, 1
        %v476 = vpop.permute.xlu0 %475
        %477 = vrot.lane.b32.xlu0 %v348, 1
        %v478 = vpop.permute.xlu0 %477
        %vm481 = vcmask 138248
        %482 = vst.msk [vmem:[#allocation2 + $0x1] sm:$0xff] %vm481, %v476
        %483 = vst.msk [vmem:[#allocation2 + $0x9] sm:$0xff] %vm481, %v478
        %486 = vrot.lane.b32.xlu0 %v363, 1
        %v487 = vpop.permute.xlu0 %486
        %488 = vrot.lane.b32.xlu0 %v364, 1
        %v489 = vpop.permute.xlu0 %488
        %s492 = scalar_lea.vmem [#allocation2], 24
        %493 = vst.msk [vmem:[%s492 + $0x1] sm:$0xff] %vm481, %v487
        %494 = vst.msk [vmem:[%s492 + $0x9] sm:$0xff] %vm481, %v489
        %s495 = sld [smem:[#allocation5]]
        %v496 = vld [vmem:[#allocation2] sm:$0xff]
        %v497 = vld [vmem:[#allocation2 + $0x8] sm:$0xff]
        %v498 = vstv %s495
        %v499 = vmul.f32 %v498, %v496
        %v500 = vmul.f32 %v498, %v497
        %v501 = vadd.f32 %v499, 0.0
        %v502 = vadd.f32 %v500, 0.0
        %s503 = sld [smem:[#allocation5 + $0x9]]
        %v504 = vld [vmem:[%s492] sm:$0xff]
        %v505 = vld [vmem:[%s492 + $0x8] sm:$0xff]
        %v506 = vstv %s503
        %v507 = vmul.f32 %v506, %v504
        %v508 = vmul.f32 %v506, %v505
        %v509 = vadd.f32 %v507, 0.0
        %v510 = vadd.f32 %v508, 0.0
        %s511 = sld [smem:[#allocation5 + $0x1]]
        %v512 = vstv %s511
        %v513 = vmul.f32 %v512, %v496
        %v514 = vmul.f32 %v512, %v497
        %517 = vrot.lane.b32.xlu0 %v513, 127
        %v518 = vpop.permute.xlu0 %517
        %519 = vrot.lane.b32.xlu0 %v514, 127
        %v520 = vpop.permute.xlu0 %519
        %v523 = vadd.f32 %v501, %v518
        %v524 = vadd.f32 %v502, %v520
        %s525 = sld [smem:[#allocation5 + $0xa]]
        %v526 = vstv %s525
        %v527 = vmul.f32 %v526, %v504
        %v528 = vmul.f32 %v526, %v505
        %531 = vrot.lane.b32.xlu0 %v527, 127
        %v532 = vpop.permute.xlu0 %531
        %533 = vrot.lane.b32.xlu0 %v528, 127
        %v534 = vpop.permute.xlu0 %533
        %v537 = vadd.f32 %v509, %v532
        %v538 = vadd.f32 %v510, %v534
        %s539 = sld [smem:[#allocation5 + $0x2]]
        %v540 = vstv %s539
        %v541 = vmul.f32 %v540, %v496
        %v542 = vmul.f32 %v540, %v497
        %545 = vrot.lane.b32.xlu0 %v541, 126
        %v546 = vpop.permute.xlu0 %545
        %547 = vrot.lane.b32.xlu0 %v542, 126
        %v548 = vpop.permute.xlu0 %547
        %v551 = vadd.f32 %v523, %v546
        %v552 = vadd.f32 %v524, %v548
        %s553 = sld [smem:[#allocation5 + $0xb]]
        %v554 = vstv %s553
        %v555 = vmul.f32 %v554, %v504
        %v556 = vmul.f32 %v554, %v505
        %559 = vrot.lane.b32.xlu0 %v555, 126
        %v560 = vpop.permute.xlu0 %559
        %561 = vrot.lane.b32.xlu0 %v556, 126
        %v562 = vpop.permute.xlu0 %561
        %v565 = vadd.f32 %v537, %v560
        %v566 = vadd.f32 %v538, %v562
        %s567 = sld [smem:[#allocation5 + $0x3]]
        %v568 = vld [vmem:[#allocation2 + $0x1] sm:$0xff]
        %v569 = vld [vmem:[#allocation2 + $0x9] sm:$0xff]
        %v570 = vstv %s567
        %v571 = vmul.f32 %v570, %v568
        %v572 = vmul.f32 %v570, %v569
        %v573 = vadd.f32 %v551, %v571
        %v574 = vadd.f32 %v552, %v572
        %s575 = sld [smem:[#allocation5 + $0xc]]
        %v576 = vld [vmem:[%s492 + $0x1] sm:$0xff]
        %v577 = vld [vmem:[%s492 + $0x9] sm:$0xff]
        %v578 = vstv %s575
        %v579 = vmul.f32 %v578, %v576
        %v580 = vmul.f32 %v578, %v577
        %v581 = vadd.f32 %v565, %v579
        %v582 = vadd.f32 %v566, %v580
        %s583 = sld [smem:[#allocation5 + $0x4]]
        %v584 = vstv %s583
        %v585 = vmul.f32 %v584, %v568
        %v586 = vmul.f32 %v584, %v569
        %589 = vrot.lane.b32.xlu0 %v585, 127
        %v590 = vpop.permute.xlu0 %589
        %591 = vrot.lane.b32.xlu0 %v586, 127
        %v592 = vpop.permute.xlu0 %591
        %v595 = vadd.f32 %v573, %v590
        %v596 = vadd.f32 %v574, %v592
        %s597 = sld [smem:[#allocation5 + $0xd]]
        %v598 = vstv %s597
        %v599 = vmul.f32 %v598, %v576
        %v600 = vmul.f32 %v598, %v577
        %603 = vrot.lane.b32.xlu0 %v599, 127
        %v604 = vpop.permute.xlu0 %603
        %605 = vrot.lane.b32.xlu0 %v600, 127
        %v606 = vpop.permute.xlu0 %605
        %v609 = vadd.f32 %v581, %v604
        %v610 = vadd.f32 %v582, %v606
        %s611 = sld [smem:[#allocation5 + $0x5]]
        %v612 = vstv %s611
        %v613 = vmul.f32 %v612, %v568
        %v614 = vmul.f32 %v612, %v569
        %617 = vrot.lane.b32.xlu0 %v613, 126
        %v618 = vpop.permute.xlu0 %617
        %619 = vrot.lane.b32.xlu0 %v614, 126
        %v620 = vpop.permute.xlu0 %619
        %v623 = vadd.f32 %v595, %v618
        %v624 = vadd.f32 %v596, %v620
        %s625 = sld [smem:[#allocation5 + $0xe]]
        %v626 = vstv %s625
        %v627 = vmul.f32 %v626, %v576
        %v628 = vmul.f32 %v626, %v577
        %631 = vrot.lane.b32.xlu0 %v627, 126
        %v632 = vpop.permute.xlu0 %631
        %633 = vrot.lane.b32.xlu0 %v628, 126
        %v634 = vpop.permute.xlu0 %633
        %v637 = vadd.f32 %v609, %v632
        %v638 = vadd.f32 %v610, %v634
        %s639 = sld [smem:[#allocation5 + $0x6]]
        %v640 = vld [vmem:[#allocation2 + $0x2] sm:$0xff]
        %v641 = vld [vmem:[#allocation2 + $0xa] sm:$0xff]
        %v642 = vstv %s639
        %v643 = vmul.f32 %v642, %v640
        %v644 = vmul.f32 %v642, %v641
        %v645 = vadd.f32 %v623, %v643
        %v646 = vadd.f32 %v624, %v644
        %s647 = sld [smem:[#allocation5 + $0xf]]
        %v648 = vld [vmem:[%s492 + $0x2] sm:$0xff]
        %v649 = vld [vmem:[%s492 + $0xa] sm:$0xff]
        %v650 = vstv %s647
        %v651 = vmul.f32 %v650, %v648
        %v652 = vmul.f32 %v650, %v649
        %v653 = vadd.f32 %v637, %v651
        %v654 = vadd.f32 %v638, %v652
        %s655 = sld [smem:[#allocation5 + $0x7]]
        %v656 = vstv %s655
        %v657 = vmul.f32 %v656, %v640
        %v658 = vmul.f32 %v656, %v641
        %661 = vrot.lane.b32.xlu0 %v657, 127
        %v662 = vpop.permute.xlu0 %661
        %663 = vrot.lane.b32.xlu0 %v658, 127
        %v664 = vpop.permute.xlu0 %663
        %v667 = vadd.f32 %v645, %v662
        %v668 = vadd.f32 %v646, %v664
        %s669 = sld [smem:[#allocation5 + $0x10]]
        %v670 = vstv %s669
        %v671 = vmul.f32 %v670, %v648
        %v672 = vmul.f32 %v670, %v649
        %675 = vrot.lane.b32.xlu0 %v671, 127
        %v676 = vpop.permute.xlu0 %675
        %677 = vrot.lane.b32.xlu0 %v672, 127
        %v678 = vpop.permute.xlu0 %677
        %v681 = vadd.f32 %v653, %v676
        %v682 = vadd.f32 %v654, %v678
        %s683 = sld [smem:[#allocation5 + $0x8]]
        %v684 = vstv %s683
        %v685 = vmul.f32 %v684, %v640
        %v686 = vmul.f32 %v684, %v641
        %689 = vrot.lane.b32.xlu0 %v685, 126
        %v690 = vpop.permute.xlu0 %689
        %691 = vrot.lane.b32.xlu0 %v686, 126
        %v692 = vpop.permute.xlu0 %691
        %v695 = vadd.f32 %v667, %v690
        %v696 = vadd.f32 %v668, %v692
        %s697 = sld [smem:[#allocation5 + $0x11]]
        %v698 = vstv %s697
        %v699 = vmul.f32 %v698, %v648
        %v700 = vmul.f32 %v698, %v649
        %703 = vrot.lane.b32.xlu0 %v699, 126
        %v704 = vpop.permute.xlu0 %703
        %705 = vrot.lane.b32.xlu0 %v700, 126
        %v706 = vpop.permute.xlu0 %705
        %v709 = vadd.f32 %v681, %v704
        %v710 = vadd.f32 %v682, %v706
        %s711 = sld [smem:[#allocation5 + $0x12]]
        %v712 = vstv %s711
        %v713 = vadd.f32 %v695, %v712
        %v714 = vadd.f32 %v696, %v712
        %s715 = sld [smem:[#allocation5 + $0x13]]
        %v716 = vstv %s715
        %v717 = vadd.f32 %v709, %v716
        %v718 = vadd.f32 %v710, %v716
        %s719 = sld [smem:[#allocation5 + $0x14]]
        %v720 = vstv %s719
        %v721 = vmul.f32 %v720, %v713
        %v722 = vmul.f32 %v720, %v714
        %s723 = sld [smem:[#allocation5 + $0x15]]
        %v724 = vstv %s723
        %v725 = vmul.f32 %v724, %v717
        %v726 = vmul.f32 %v724, %v718
        %v727 = vadd.f32 %v721, %v725
        %v728 = vadd.f32 %v722, %v726
        %s729 = sld [smem:[#allocation5 + $0x18]]
        %v730 = vstv %s729
        %v731 = vadd.f32 %v727, %v730
        %v732 = vadd.f32 %v728, %v730
        %s733 = sld [smem:[#allocation5 + $0x16]]
        %v734 = vstv %s733
        %v735 = vmul.f32 %v734, %v713
        %v736 = vmul.f32 %v734, %v714
        %s737 = sld [smem:[#allocation5 + $0x17]]
        %v738 = vstv %s737
        %v739 = vmul.f32 %v738, %v717
        %v740 = vmul.f32 %v738, %v718
        %v741 = vadd.f32 %v735, %v739
        %v742 = vadd.f32 %v736, %v740
        %s743 = sld [smem:[#allocation5 + $0x19]]
        %v744 = vstv %s743
        %v745 = vadd.f32 %v741, %v744
        %v746 = vadd.f32 %v742, %v744
        %v747 = vsel %vm334, %v731, 0.0
        %748 = vadd.xlane.f32.xlu0 %v747
        %v749 = vpop.xlane.xlu0 %748
        %v750 = vsel %vm334, %v732, 0.0
        %751 = vadd.xlane.f32.xlu0 %v750
        %v752 = vpop.xlane.xlu0 %751
        %v753 = vadd.f32 %v749, %v752
        %v754 = vrot.slane %v753, 4
        %v755 = vadd.f32 %v753, %v754
        %v756 = vrot.slane %v755, 2
        %v757 = vadd.f32 %v755, %v756
        %v758 = vrot.slane %v757, 1
        %v759 = vadd.f32 %v757, %v758
        %v760 = vmul.f32 %v759, 0.00390625
        %v761 = vsub.f32 %v731, %v760
        %v762 = vsub.f32 %v732, %v760
        %v763 = vmul.f32 %v761, %v761
        %v764 = vmul.f32 %v762, %v762
        %v765 = vsel %vm334, %v763, 0.0
        %766 = vadd.xlane.f32.xlu0 %v765
        %v767 = vpop.xlane.xlu0 %766
        %v768 = vsel %vm334, %v764, 0.0
        %769 = vadd.xlane.f32.xlu0 %v768
        %v770 = vpop.xlane.xlu0 %769
        %v771 = vadd.f32 %v767, %v770
        %v772 = vrot.slane %v771, 4
        %v773 = vadd.f32 %v771, %v772
        %v774 = vrot.slane %v773, 2
        %v775 = vadd.f32 %v773, %v774
        %v776 = vrot.slane %v775, 1
        %v777 = vadd.f32 %v775, %v776
        %v778 = vmul.f32 %v777, 0.00390625
        %v779 = vadd.f32 %v778, 1e-05
        %v780 = vrsqrt.pop %v779
        %s781 = sld [smem:[#allocation5 + $0x1a]]
        %v782 = vstv %s781
        %v783 = vmul.f32 %v780, %v782
        %v784 = vmul.f32 %v761, %v783
        %v785 = vmul.f32 %v762, %v783
        %s786 = sld [smem:[#allocation5 + $0x1b]]
        %v787 = vstv %s786
        %v788 = vadd.f32 %v784, %v787
        %v789 = vadd.f32 %v785, %v787
        %s790 = sld [smem:[#allocation5 + $0x1e]]
        %s791 = sld [smem:[#allocation5 + $0x1d]]
        %s792 = sadd.f32 %s791, 1e-05
        %v793 = vstv %s792
        %v794 = vrsqrt.pop %v793
        %v795 = vmul.f32 %v793, %v794
        %vm796 = vcmp.eq.f32.partialorder %v793, inf
        %v797 = vsel %vm796, %v793, %v795
        %vm798 = vcmp.eq.f32.partialorder %v793, 0.0
        %v799 = vand.u32 %v793, 2147483648
        %v800 = vsel %vm798, %v799, %v797
        %s801 = vtos %v800
        %v802 = vstv %s801
        %v803 = vrcp.pop %v802
        %s804 = vtos %v803
        %s805 = smul.f32 %s790, %s804
        %s806 = sld [smem:[#allocation5 + $0x1c]]
        %v807 = vstv %s806
        %v808 = vsub.f32 %v745, %v807
        %v809 = vsub.f32 %v746, %v807
        %v810 = vstv %s805
        %v811 = vmul.f32 %v808, %v810
        %v812 = vmul.f32 %v809, %v810
        %s813 = sld [smem:[#allocation5 + $0x1f]]
        %v814 = vstv %s813
        %v815 = vadd.f32 %v811, %v814
        %v816 = vadd.f32 %v812, %v814
        %s817 = sld [smem:[#allocation5 + $0x20]]
        %v818 = vstv %s817
        %v819 = vmul.f32 %v818, %v788
        %v820 = vmul.f32 %v818, %v789
        %s821 = sld [smem:[#allocation5 + $0x21]]
        %v822 = vstv %s821
        %v823 = vmul.f32 %v822, %v815
        %v824 = vmul.f32 %v822, %v816
        %v825 = vadd.f32 %v819, %v823
        %v826 = vadd.f32 %v820, %v824
        %v827 = vxor.u32 %v825, 2147483648
        %v828 = vxor.u32 %v826, 2147483648
        %v829 = vmul.f32 %v827, 1.442695
        %v830 = vpow.pop %v829
        %v831 = vmul.f32 %v828, 1.442695
        %v832 = vpow.pop %v831
        %v833 = vadd.f32 %v830, 1.0
        %v834 = vadd.f32 %v832, 1.0
        %v835 = vrcp.pop %v833
        %v836 = vmul.f32 1.0, %v835
        %v837 = vrcp.pop %v834
        %v838 = vmul.f32 1.0, %v837
        %vm839 = vcmask 144384
        %840 = vst.msk [vmem:[#allocation3] sm:$0x3f] %vm839, 0.0
        %841 = vst.msk [vmem:[#allocation3 + $0x8] sm:$0x3f] %vm839, 0.0
        %vm846 = vcmask 1041409
        %v847 = vsel %vm846, %v378, %v371
        %vm848 = vcmask 1042434
        %v849 = vsel %vm848, %v385, %v847
        %vm850 = vcmask 1043459
        %v851 = vsel %vm850, %v392, %v849
        %852 = vrot.lane.b32.xlu0 %v851, 1
        %v853 = vpop.permute.xlu0 %852
        %vm855 = vcmask 134152
        %856 = vst.msk [vmem:[#allocation3 + $0x1] sm:$0xf] %vm855, %v853
        %v861 = vsel %vm846, %v422, %v421
        %v862 = vsel %vm848, %v423, %v861
        %v863 = vsel %vm850, %v424, %v862
        %864 = vrot.lane.b32.xlu0 %v863, 1
        %v865 = vpop.permute.xlu0 %864
        %s867 = scalar_lea.vmem [#allocation3], 8
        %868 = vst.msk [vmem:[%s867 + $0x1] sm:$0xf] %vm855, %v865
        %s869 = sld [smem:[#allocation10]]
        %v870 = vld [vmem:[#allocation3] sm:$0xf]
        %v871 = vstv %s869
        %v872 = vmul.f32 %v871, %v870
        %v873 = vadd.f32 %v872, 0.0
        %s874 = sld [smem:[#allocation10 + $0x9]]
        %v875 = vld [vmem:[%s867] sm:$0xf]
        %v876 = vstv %s874
        %v877 = vmul.f32 %v876, %v875
        %v878 = vadd.f32 %v877, 0.0
        %s879 = sld [smem:[#allocation10 + $0x1]]
        %v880 = vstv %s879
        %v881 = vmul.f32 %v880, %v870
        %883 = vrot.lane.b32.xlu0 %v881, 127
        %v884 = vpop.permute.xlu0 %883
        %v886 = vadd.f32 %v873, %v884
        %s887 = sld [smem:[#allocation10 + $0xa]]
        %v888 = vstv %s887
        %v889 = vmul.f32 %v888, %v875
        %891 = vrot.lane.b32.xlu0 %v889, 127
        %v892 = vpop.permute.xlu0 %891
        %v894 = vadd.f32 %v878, %v892
        %s895 = sld [smem:[#allocation10 + $0x2]]
        %v896 = vstv %s895
        %v897 = vmul.f32 %v896, %v870
        %899 = vrot.lane.b32.xlu0 %v897, 126
        %v900 = vpop.permute.xlu0 %899
        %v902 = vadd.f32 %v886, %v900
        %s903 = sld [smem:[#allocation10 + $0xb]]
        %v904 = vstv %s903
        %v905 = vmul.f32 %v904, %v875
        %907 = vrot.lane.b32.xlu0 %v905, 126
        %v908 = vpop.permute.xlu0 %907
        %v910 = vadd.f32 %v894, %v908
        %s911 = sld [smem:[#allocation10 + $0x3]]
        %v912 = vld [vmem:[#allocation3 + $0x1] sm:$0xf]
        %v913 = vstv %s911
        %v914 = vmul.f32 %v913, %v912
        %v915 = vadd.f32 %v902, %v914
        %s916 = sld [smem:[#allocation10 + $0xc]]
        %v917 = vld [vmem:[%s867 + $0x1] sm:$0xf]
        %v918 = vstv %s916
        %v919 = vmul.f32 %v918, %v917
        %v920 = vadd.f32 %v910, %v919
        %s921 = sld [smem:[#allocation10 + $0x4]]
        %v922 = vstv %s921
        %v923 = vmul.f32 %v922, %v912
        %925 = vrot.lane.b32.xlu0 %v923, 127
        %v926 = vpop.permute.xlu0 %925
        %v928 = vadd.f32 %v915, %v926
        %s929 = sld [smem:[#allocation10 + $0xd]]
        %v930 = vstv %s929
        %v931 = vmul.f32 %v930, %v917
        %933 = vrot.lane.b32.xlu0 %v931, 127
        %v934 = vpop.permute.xlu0 %933
        %v936 = vadd.f32 %v920, %v934
        %s937 = sld [smem:[#allocation10 + $0x5]]
        %v938 = vstv %s937
        %v939 = vmul.f32 %v938, %v912
        %941 = vrot.lane.b32.xlu0 %v939, 126
        %v942 = vpop.permute.xlu0 %941
        %v944 = vadd.f32 %v928, %v942
        %s945 = sld [smem:[#allocation10 + $0xe]]
        %v946 = vstv %s945
        %v947 = vmul.f32 %v946, %v917
        %949 = vrot.lane.b32.xlu0 %v947, 126
        %v950 = vpop.permute.xlu0 %949
        %v952 = vadd.f32 %v936, %v950
        %s953 = sld [smem:[#allocation10 + $0x6]]
        %v954 = vld [vmem:[#allocation3 + $0x2] sm:$0xf]
        %v955 = vstv %s953
        %v956 = vmul.f32 %v955, %v954
        %v957 = vadd.f32 %v944, %v956
        %s958 = sld [smem:[#allocation10 + $0xf]]
        %v959 = vld [vmem:[%s867 + $0x2] sm:$0xf]
        %v960 = vstv %s958
        %v961 = vmul.f32 %v960, %v959
        %v962 = vadd.f32 %v952, %v961
        %s963 = sld [smem:[#allocation10 + $0x7]]
        %v964 = vstv %s963
        %v965 = vmul.f32 %v964, %v954
        %967 = vrot.lane.b32.xlu0 %v965, 127
        %v968 = vpop.permute.xlu0 %967
        %v970 = vadd.f32 %v957, %v968
        %s971 = sld [smem:[#allocation10 + $0x10]]
        %v972 = vstv %s971
        %v973 = vmul.f32 %v972, %v959
        %975 = vrot.lane.b32.xlu0 %v973, 127
        %v976 = vpop.permute.xlu0 %975
        %v978 = vadd.f32 %v962, %v976
        %s979 = sld [smem:[#allocation10 + $0x8]]
        %v980 = vstv %s979
        %v981 = vmul.f32 %v980, %v954
        %983 = vrot.lane.b32.xlu0 %v981, 126
        %v984 = vpop.permute.xlu0 %983
        %v986 = vadd.f32 %v970, %v984
        %s987 = sld [smem:[#allocation10 + $0x11]]
        %v988 = vstv %s987
        %v989 = vmul.f32 %v988, %v959
        %991 = vrot.lane.b32.xlu0 %v989, 126
        %v992 = vpop.permute.xlu0 %991
        %v994 = vadd.f32 %v978, %v992
        %s995 = sld [smem:[#allocation10 + $0x12]]
        %v996 = vstv %s995
        %v997 = vadd.f32 %v986, %v996
        %s998 = sld [smem:[#allocation10 + $0x13]]
        %v999 = vstv %s998
        %v1000 = vadd.f32 %v994, %v999
        %s1001 = sld [smem:[#allocation10 + $0x14]]
        %v1002 = vstv %s1001
        %v1003 = vmul.f32 %v1002, %v997
        %s1004 = sld [smem:[#allocation10 + $0x15]]
        %v1005 = vstv %s1004
        %v1006 = vmul.f32 %v1005, %v1000
        %v1007 = vadd.f32 %v1003, %v1006
        %s1008 = sld [smem:[#allocation10 + $0x18]]
        %v1009 = vstv %s1008
        %v1010 = vadd.f32 %v1007, %v1009
        %s1011 = sld [smem:[#allocation10 + $0x16]]
        %v1012 = vstv %s1011
        %v1013 = vmul.f32 %v1012, %v997
        %s1014 = sld [smem:[#allocation10 + $0x17]]
        %v1015 = vstv %s1014
        %v1016 = vmul.f32 %v1015, %v1000
        %v1017 = vadd.f32 %v1013, %v1016
        %s1018 = sld [smem:[#allocation10 + $0x19]]
        %v1019 = vstv %s1018
        %v1020 = vadd.f32 %v1017, %v1019
        %vm1021 = vcmask 125952
        %v1022 = vsel %vm1021, %v1010, 0.0
        %1023 = vadd.xlane.f32.xlu0 %v1022
        %v1024 = vpop.xlane.xlu0 %1023
        %vm1025 = vcmask 1043456
        %v1026 = vsel %vm1025, %v1024, 0.0
        %v1027 = vrot.slane %v1026, 4
        %v1028 = vadd.f32 %v1026, %v1027
        %v1029 = vrot.slane %v1028, 2
        %v1030 = vadd.f32 %v1028, %v1029
        %v1031 = vrot.slane %v1030, 1
        %v1032 = vadd.f32 %v1030, %v1031
        %v1033 = vmul.f32 %v1032, 0.015625
        %v1034 = vsub.f32 %v1010, %v1033
        %v1035 = vmul.f32 %v1034, %v1034
        %v1036 = vsel %vm1021, %v1035, 0.0
        %1037 = vadd.xlane.f32.xlu0 %v1036
        %v1038 = vpop.xlane.xlu0 %1037
        %v1039 = vsel %vm1025, %v1038, 0.0
        %v1040 = vrot.slane %v1039, 4
        %v1041 = vadd.f32 %v1039, %v1040
        %v1042 = vrot.slane %v1041, 2
        %v1043 = vadd.f32 %v1041, %v1042
        %v1044 = vrot.slane %v1043, 1
        %v1045 = vadd.f32 %v1043, %v1044
        %v1046 = vmul.f32 %v1045, 0.015625
        %v1047 = vadd.f32 %v1046, 1e-05
        %v1048 = vrsqrt.pop %v1047
        %s1049 = sld [smem:[#allocation10 + $0x1a]]
        %v1050 = vstv %s1049
        %v1051 = vmul.f32 %v1048, %v1050
        %v1052 = vmul.f32 %v1034, %v1051
        %s1053 = sld [smem:[#allocation10 + $0x1b]]
        %v1054 = vstv %s1053
        %v1055 = vadd.f32 %v1052, %v1054
        %s1056 = sld [smem:[#allocation10 + $0x1e]]
        %s1057 = sld [smem:[#allocation10 + $0x1d]]
        %s1058 = sadd.f32 %s1057, 1e-05
        %v1059 = vstv %s1058
        %v1060 = vrsqrt.pop %v1059
        %v1061 = vmul.f32 %v1059, %v1060
        %vm1062 = vcmp.eq.f32.partialorder %v1059, inf
        %v1063 = vsel %vm1062, %v1059, %v1061
        %vm1064 = vcmp.eq.f32.partialorder %v1059, 0.0
        %v1065 = vand.u32 %v1059, 2147483648
        %v1066 = vsel %vm1064, %v1065, %v1063
        %s1067 = vtos %v1066
        %v1068 = vstv %s1067
        %v1069 = vrcp.pop %v1068
        %s1070 = vtos %v1069
        %s1071 = smul.f32 %s1056, %s1070
        %s1072 = sld [smem:[#allocation10 + $0x1c]]
        %v1073 = vstv %s1072
        %v1074 = vsub.f32 %v1020, %v1073
        %v1075 = vstv %s1071
        %v1076 = vmul.f32 %v1074, %v1075
        %s1077 = sld [smem:[#allocation10 + $0x1f]]
        %v1078 = vstv %s1077
        %v1079 = vadd.f32 %v1076, %v1078
        %s1080 = sld [smem:[#allocation10 + $0x20]]
        %v1081 = vstv %s1080
        %v1082 = vmul.f32 %v1081, %v1055
        %s1083 = sld [smem:[#allocation10 + $0x21]]
        %v1084 = vstv %s1083
        %v1085 = vmul.f32 %v1084, %v1079
        %v1086 = vadd.f32 %v1082, %v1085
        %v1087 = vxor.u32 %v1086, 2147483648
        %v1088 = vmul.f32 %v1087, 1.442695
        %v1089 = vpow.pop %v1088
        %v1090 = vadd.f32 %v1089, 1.0
        %v1091 = vrcp.pop %v1090
        %v1092 = vmul.f32 1.0, %v1091
        %1093 = vst.msk [vmem:[#allocation4] sm:$0x3f] %vm839, 0.0
        %1094 = vst.msk [vmem:[#allocation4 + $0x8] sm:$0x3f] %vm839, 0.0
        %v1103 = vlaneseq
        %v1104 = vand.u32 %v1103, 127
        %v1105 = vadd.s32 %v1104, 4294967295
        %v1106 = vlaneseq
        %v1107 = vshrl.u32 %v1106, 7
        %v1108 = vsub.s32 %v1105, %v1107
        %v1109 = vrot.slane %v426, %v1108
        %v1110 = vadd.s32 %v1104, 4294967287
        %v1111 = vlaneseq
        %v1112 = vshrl.u32 %v1111, 7
        %v1113 = vsub.s32 %v1110, %v1112
        %v1114 = vrot.slane %v428, %v1113
        %vm1115 = vcmask 138312
        %v1116 = vsel %vm1115, %v1114, %v1109
        %v1117 = vlaneseq
        %v1118 = vshrl.u32 %v1117, 7
        %v1119 = vsub.s32 %v1105, %v1118
        %v1120 = vrot.slane %v430, %v1119
        %v1121 = vlaneseq
        %v1122 = vshrl.u32 %v1121, 7
        %v1123 = vsub.s32 %v1110, %v1122
        %v1124 = vrot.slane %v432, %v1123
        %v1125 = vsel %vm1115, %v1124, %v1120
        %v1126 = vlaneseq
        %v1127 = vshrl.u32 %v1126, 7
        %v1128 = vsub.s32 %v1105, %v1127
        %v1129 = vrot.slane %v434, %v1128
        %v1130 = vlaneseq
        %v1131 = vshrl.u32 %v1130, 7
        %v1132 = vsub.s32 %v1110, %v1131
        %v1133 = vrot.slane %v436, %v1132
        %v1134 = vsel %vm1115, %v1133, %v1129
        %v1135 = vlaneseq
        %v1136 = vshrl.u32 %v1135, 7
        %v1137 = vsub.s32 %v1105, %v1136
        %v1138 = vrot.slane %v438, %v1137
        %v1139 = vlaneseq
        %v1140 = vshrl.u32 %v1139, 7
        %v1141 = vsub.s32 %v1110, %v1140
        %v1142 = vrot.slane %v440, %v1141
        %v1143 = vsel %vm1115, %v1142, %v1138
        %v1144 = vsel %vm846, %v1125, %v1116
        %v1145 = vsel %vm848, %v1134, %v1144
        %v1146 = vsel %vm850, %v1143, %v1145
        %1148 = vst.msk [vmem:[#allocation4 + $0x1] sm:$0xf] %vm855, %v1146
        %v1157 = vlaneseq
        %v1158 = vshrl.u32 %v1157, 7
        %v1159 = vsub.s32 %v1105, %v1158
        %v1160 = vrot.slane %v457, %v1159
        %v1161 = vlaneseq
        %v1162 = vshrl.u32 %v1161, 7
        %v1163 = vsub.s32 %v1110, %v1162
        %v1164 = vrot.slane %v458, %v1163
        %v1165 = vsel %vm1115, %v1164, %v1160
        %v1166 = vlaneseq
        %v1167 = vshrl.u32 %v1166, 7
        %v1168 = vsub.s32 %v1105, %v1167
        %v1169 = vrot.slane %v459, %v1168
        %v1170 = vlaneseq
        %v1171 = vshrl.u32 %v1170, 7
        %v1172 = vsub.s32 %v1110, %v1171
        %v1173 = vrot.slane %v460, %v1172
        %v1174 = vsel %vm1115, %v1173, %v1169
        %v1175 = vlaneseq
        %v1176 = vshrl.u32 %v1175, 7
        %v1177 = vsub.s32 %v1105, %v1176
        %v1178 = vrot.slane %v461, %v1177
        %v1179 = vlaneseq
        %v1180 = vshrl.u32 %v1179, 7
        %v1181 = vsub.s32 %v1110, %v1180
        %v1182 = vrot.slane %v462, %v1181
        %v1183 = vsel %vm1115, %v1182, %v1178
        %v1184 = vlaneseq
        %v1185 = vshrl.u32 %v1184, 7
        %v1186 = vsub.s32 %v1105, %v1185
        %v1187 = vrot.slane %v463, %v1186
        %v1188 = vlaneseq
        %v1189 = vshrl.u32 %v1188, 7
        %v1190 = vsub.s32 %v1110, %v1189
        %v1191 = vrot.slane %v464, %v1190
        %v1192 = vsel %vm1115, %v1191, %v1187
        %v1193 = vsel %vm846, %v1174, %v1165
        %v1194 = vsel %vm848, %v1183, %v1193
        %v1195 = vsel %vm850, %v1192, %v1194
        %s1197 = scalar_lea.vmem [#allocation4], 8
        %1198 = vst.msk [vmem:[%s1197 + $0x1] sm:$0xf] %vm855, %v1195
        %s1199 = sld [smem:[#allocation11]]
        %v1200 = vld [vmem:[#allocation4] sm:$0xf]
        %v1201 = vstv %s1199
        %v1202 = vmul.f32 %v1201, %v1200
        %v1203 = vadd.f32 %v1202, 0.0
        %s1204 = sld [smem:[#allocation11 + $0x9]]
        %v1205 = vld [vmem:[%s1197] sm:$0xf]
        %v1206 = vstv %s1204
        %v1207 = vmul.f32 %v1206, %v1205
        %v1208 = vadd.f32 %v1207, 0.0
        %s1209 = sld [smem:[#allocation11 + $0x3]]
        %v1210 = vstv %s1209
        %v1211 = vmul.f32 %v1210, %v1200
        %1213 = vrot.lane.b32.xlu0 %v1211, 127
        %v1214 = vpop.permute.xlu0 %1213
        %v1216 = vadd.f32 %v1203, %v1214
        %s1217 = sld [smem:[#allocation11 + $0xc]]
        %v1218 = vstv %s1217
        %v1219 = vmul.f32 %v1218, %v1205
        %1221 = vrot.lane.b32.xlu0 %v1219, 127
        %v1222 = vpop.permute.xlu0 %1221
        %v1224 = vadd.f32 %v1208, %v1222
        %s1225 = sld [smem:[#allocation11 + $0x6]]
        %v1226 = vstv %s1225
        %v1227 = vmul.f32 %v1226, %v1200
        %1229 = vrot.lane.b32.xlu0 %v1227, 126
        %v1230 = vpop.permute.xlu0 %1229
        %v1232 = vadd.f32 %v1216, %v1230
        %s1233 = sld [smem:[#allocation11 + $0xf]]
        %v1234 = vstv %s1233
        %v1235 = vmul.f32 %v1234, %v1205
        %1237 = vrot.lane.b32.xlu0 %v1235, 126
        %v1238 = vpop.permute.xlu0 %1237
        %v1240 = vadd.f32 %v1224, %v1238
        %s1241 = sld [smem:[#allocation11 + $0x1]]
        %v1242 = vld [vmem:[#allocation4 + $0x1] sm:$0xf]
        %v1243 = vstv %s1241
        %v1244 = vmul.f32 %v1243, %v1242
        %v1245 = vadd.f32 %v1232, %v1244
        %s1246 = sld [smem:[#allocation11 + $0xa]]
        %v1247 = vld [vmem:[%s1197 + $0x1] sm:$0xf]
        %v1248 = vstv %s1246
        %v1249 = vmul.f32 %v1248, %v1247
        %v1250 = vadd.f32 %v1240, %v1249
        %s1251 = sld [smem:[#allocation11 + $0x4]]
        %v1252 = vstv %s1251
        %v1253 = vmul.f32 %v1252, %v1242
        %1255 = vrot.lane.b32.xlu0 %v1253, 127
        %v1256 = vpop.permute.xlu0 %1255
        %v1258 = vadd.f32 %v1245, %v1256
        %s1259 = sld [smem:[#allocation11 + $0xd]]
        %v1260 = vstv %s1259
        %v1261 = vmul.f32 %v1260, %v1247
        %1263 = vrot.lane.b32.xlu0 %v1261, 127
        %v1264 = vpop.permute.xlu0 %1263
        %v1266 = vadd.f32 %v1250, %v1264
        %s1267 = sld [smem:[#allocation11 + $0x7]]
        %v1268 = vstv %s1267
        %v1269 = vmul.f32 %v1268, %v1242
        %1271 = vrot.lane.b32.xlu0 %v1269, 126
        %v1272 = vpop.permute.xlu0 %1271
        %v1274 = vadd.f32 %v1258, %v1272
        %s1275 = sld [smem:[#allocation11 + $0x10]]
        %v1276 = vstv %s1275
        %v1277 = vmul.f32 %v1276, %v1247
        %1279 = vrot.lane.b32.xlu0 %v1277, 126
        %v1280 = vpop.permute.xlu0 %1279
        %v1282 = vadd.f32 %v1266, %v1280
        %s1283 = sld [smem:[#allocation11 + $0x2]]
        %v1284 = vld [vmem:[#allocation4 + $0x2] sm:$0xf]
        %v1285 = vstv %s1283
        %v1286 = vmul.f32 %v1285, %v1284
        %v1287 = vadd.f32 %v1274, %v1286
        %s1288 = sld [smem:[#allocation11 + $0xb]]
        %v1289 = vld [vmem:[%s1197 + $0x2] sm:$0xf]
        %v1290 = vstv %s1288
        %v1291 = vmul.f32 %v1290, %v1289
        %v1292 = vadd.f32 %v1282, %v1291
        %s1293 = sld [smem:[#allocation11 + $0x5]]
        %v1294 = vstv %s1293
        %v1295 = vmul.f32 %v1294, %v1284
        %1297 = vrot.lane.b32.xlu0 %v1295, 127
        %v1298 = vpop.permute.xlu0 %1297
        %v1300 = vadd.f32 %v1287, %v1298
        %s1301 = sld [smem:[#allocation11 + $0xe]]
        %v1302 = vstv %s1301
        %v1303 = vmul.f32 %v1302, %v1289
        %1305 = vrot.lane.b32.xlu0 %v1303, 127
        %v1306 = vpop.permute.xlu0 %1305
        %v1308 = vadd.f32 %v1292, %v1306
        %s1309 = sld [smem:[#allocation11 + $0x8]]
        %v1310 = vstv %s1309
        %v1311 = vmul.f32 %v1310, %v1284
        %1313 = vrot.lane.b32.xlu0 %v1311, 126
        %v1314 = vpop.permute.xlu0 %1313
        %v1316 = vadd.f32 %v1300, %v1314
        %s1317 = sld [smem:[#allocation11 + $0x11]]
        %v1318 = vstv %s1317
        %v1319 = vmul.f32 %v1318, %v1289
        %1321 = vrot.lane.b32.xlu0 %v1319, 126
        %v1322 = vpop.permute.xlu0 %1321
        %v1324 = vadd.f32 %v1308, %v1322
        %s1325 = sld [smem:[#allocation11 + $0x12]]
        %v1326 = vstv %s1325
        %v1327 = vadd.f32 %v1316, %v1326
        %s1328 = sld [smem:[#allocation11 + $0x13]]
        %v1329 = vstv %s1328
        %v1330 = vadd.f32 %v1324, %v1329
        %s1331 = sld [smem:[#allocation11 + $0x14]]
        %v1332 = vstv %s1331
        %v1333 = vmul.f32 %v1332, %v1327
        %s1334 = sld [smem:[#allocation11 + $0x15]]
        %v1335 = vstv %s1334
        %v1336 = vmul.f32 %v1335, %v1330
        %v1337 = vadd.f32 %v1333, %v1336
        %s1338 = sld [smem:[#allocation11 + $0x18]]
        %v1339 = vstv %s1338
        %v1340 = vadd.f32 %v1337, %v1339
        %s1341 = sld [smem:[#allocation11 + $0x16]]
        %v1342 = vstv %s1341
        %v1343 = vmul.f32 %v1342, %v1327
        %s1344 = sld [smem:[#allocation11 + $0x17]]
        %v1345 = vstv %s1344
        %v1346 = vmul.f32 %v1345, %v1330
        %v1347 = vadd.f32 %v1343, %v1346
        %s1348 = sld [smem:[#allocation11 + $0x19]]
        %v1349 = vstv %s1348
        %v1350 = vadd.f32 %v1347, %v1349
        %v1351 = vsel %vm1021, %v1340, 0.0
        %1352 = vadd.xlane.f32.xlu0 %v1351
        %v1353 = vpop.xlane.xlu0 %1352
        %v1354 = vsel %vm1025, %v1353, 0.0
        %v1355 = vrot.slane %v1354, 4
        %v1356 = vadd.f32 %v1354, %v1355
        %v1357 = vrot.slane %v1356, 2
        %v1358 = vadd.f32 %v1356, %v1357
        %v1359 = vrot.slane %v1358, 1
        %v1360 = vadd.f32 %v1358, %v1359
        %v1361 = vmul.f32 %v1360, 0.015625
        %v1362 = vsub.f32 %v1340, %v1361
        %v1363 = vmul.f32 %v1362, %v1362
        %v1364 = vsel %vm1021, %v1363, 0.0
        %1365 = vadd.xlane.f32.xlu0 %v1364
        %v1366 = vpop.xlane.xlu0 %1365
        %v1367 = vsel %vm1025, %v1366, 0.0
        %v1368 = vrot.slane %v1367, 4
        %v1369 = vadd.f32 %v1367, %v1368
        %v1370 = vrot.slane %v1369, 2
        %v1371 = vadd.f32 %v1369, %v1370
        %v1372 = vrot.slane %v1371, 1
        %v1373 = vadd.f32 %v1371, %v1372
        %v1374 = vmul.f32 %v1373, 0.015625
        %v1375 = vadd.f32 %v1374, 1e-05
        %v1376 = vrsqrt.pop %v1375
        %s1377 = sld [smem:[#allocation11 + $0x1a]]
        %v1378 = vstv %s1377
        %v1379 = vmul.f32 %v1376, %v1378
        %v1380 = vmul.f32 %v1362, %v1379
        %s1381 = sld [smem:[#allocation11 + $0x1b]]
        %v1382 = vstv %s1381
        %v1383 = vadd.f32 %v1380, %v1382
        %s1384 = sld [smem:[#allocation11 + $0x1e]]
        %s1385 = sld [smem:[#allocation11 + $0x1d]]
        %s1386 = sadd.f32 %s1385, 1e-05
        %v1387 = vstv %s1386
        %v1388 = vrsqrt.pop %v1387
        %v1389 = vmul.f32 %v1387, %v1388
        %vm1390 = vcmp.eq.f32.partialorder %v1387, inf
        %v1391 = vsel %vm1390, %v1387, %v1389
        %vm1392 = vcmp.eq.f32.partialorder %v1387, 0.0
        %v1393 = vand.u32 %v1387, 2147483648
        %v1394 = vsel %vm1392, %v1393, %v1391
        %s1395 = vtos %v1394
        %v1396 = vstv %s1395
        %v1397 = vrcp.pop %v1396
        %s1398 = vtos %v1397
        %s1399 = smul.f32 %s1384, %s1398
        %s1400 = sld [smem:[#allocation11 + $0x1c]]
        %v1401 = vstv %s1400
        %v1402 = vsub.f32 %v1350, %v1401
        %v1403 = vstv %s1399
        %v1404 = vmul.f32 %v1402, %v1403
        %s1405 = sld [smem:[#allocation11 + $0x1f]]
        %v1406 = vstv %s1405
        %v1407 = vadd.f32 %v1404, %v1406
        %s1408 = sld [smem:[#allocation11 + $0x20]]
        %v1409 = vstv %s1408
        %v1410 = vmul.f32 %v1409, %v1383
        %s1411 = sld [smem:[#allocation11 + $0x21]]
        %v1412 = vstv %s1411
        %v1413 = vmul.f32 %v1412, %v1407
        %v1414 = vadd.f32 %v1410, %v1413
        %v1415 = vxor.u32 %v1414, 2147483648
        %v1416 = vmul.f32 %v1415, 1.442695
        %v1417 = vpow.pop %v1416
        %v1418 = vadd.f32 %v1417, 1.0
        %v1419 = vrcp.pop %v1418
        %v1420 = vmul.f32 1.0, %v1419
        %v1421 = vld [vmem:[%s286] sm:$0xff]
        %v1422 = vld [vmem:[%s286 + $0x8] sm:$0xff]
        %v1423 = vld [vmem:[%s286 + $0x10] sm:$0xff]
        %v1424 = vld [vmem:[%s286 + $0x18] sm:$0xff]
        %v1425 = vld [vmem:[%s286 + $0x20] sm:$0xff]
        %v1426 = vld [vmem:[%s286 + $0x28] sm:$0xff]
        %v1427 = vld [vmem:[%s286 + $0x30] sm:$0xff]
        %v1428 = vld [vmem:[%s286 + $0x38] sm:$0xff]
        %v1429 = vmul.f32 %v1421, %v836
        %v1430 = vmul.f32 %v1422, %v838
        %v1431 = vmul.f32 %v1423, %v836
        %v1432 = vmul.f32 %v1424, %v838
        %v1433 = vmul.f32 %v1425, %v836
        %v1434 = vmul.f32 %v1426, %v838
        %v1435 = vmul.f32 %v1427, %v836
        %v1436 = vmul.f32 %v1428, %v838
        %1437 = vst.msk [vmem:[%s311] sm:$0xff] %vm334, %v1429
        %1438 = vst.msk [vmem:[%s311 + $0x8] sm:$0xff] %vm334, %v1430
        %1439 = vst.msk [vmem:[%s311 + $0x10] sm:$0xff] %vm334, %v1431
        %1440 = vst.msk [vmem:[%s311 + $0x18] sm:$0xff] %vm334, %v1432
        %1441 = vst.msk [vmem:[%s311 + $0x20] sm:$0xff] %vm334, %v1433
        %1442 = vst.msk [vmem:[%s311 + $0x28] sm:$0xff] %vm334, %v1434
        %1443 = vst.msk [vmem:[%s311 + $0x30] sm:$0xff] %vm334, %v1435
        %1444 = vst.msk [vmem:[%s311 + $0x38] sm:$0xff] %vm334, %v1436
        %v1445 = vld [vmem:[%s286] sm:$0xff]
        %v1446 = vld [vmem:[%s286 + $0x8] sm:$0xff]
        %v1447 = vld [vmem:[%s286 + $0x10] sm:$0xff]
        %v1448 = vld [vmem:[%s286 + $0x18] sm:$0xff]
        %v1449 = vld [vmem:[%s286 + $0x20] sm:$0xff]
        %v1450 = vld [vmem:[%s286 + $0x28] sm:$0xff]
        %v1451 = vld [vmem:[%s286 + $0x30] sm:$0xff]
        %v1452 = vld [vmem:[%s286 + $0x38] sm:$0xff]
        %v1455 = vunpack.c.l.s4 1966171168
        %v1456 = vunpack.c.0.s8 %v1455
        %v1457 = vlaneseq
        %v1458 = vshrl.u32 %v1457, 7
        %v1459 = vsub.s32 %v1456, %v1458
        %v1460 = vrot.slane %v1092, %v1459
        %v1461 = vcombine.high %v1460, %v1460
        %v1463 = vunpack.c.l.s4 1966171168
        %v1464 = vunpack.c.0.s8 %v1463
        %v1465 = vlaneseq
        %v1466 = vshrl.u32 %v1465, 7
        %v1467 = vsub.s32 %v1464, %v1466
        %v1468 = vrot.slane %v1460, %v1467
        %v1470 = vunpack.c.l.s4 1966171168
        %v1471 = vunpack.c.0.s8 %v1470
        %v1472 = vlaneseq
        %v1473 = vshrl.u32 %v1472, 7
        %v1474 = vsub.s32 %v1471, %v1473
        %v1475 = vrot.slane %v1461, %v1474
        %v1476 = vcombine.high %v1468, %v1468
        %v1477 = vcombine.high %v1475, %v1475
        %v1478 = vlaneseq
        %v1479 = vshrl.u32 %v1478, 7
        %v1480 = vsub.s32 0, %v1479
        %v1481 = vrot.slane %v1468, %v1480
        %v1482 = vlaneseq
        %v1483 = vshrl.u32 %v1482, 7
        %v1484 = vsub.s32 0, %v1483
        %v1485 = vrot.slane %v1475, %v1484
        %v1486 = vlaneseq
        %v1487 = vshrl.u32 %v1486, 7
        %v1488 = vsub.s32 0, %v1487
        %v1489 = vrot.slane %v1476, %v1488
        %v1490 = vlaneseq
        %v1491 = vshrl.u32 %v1490, 7
        %v1492 = vsub.s32 0, %v1491
        %v1493 = vrot.slane %v1477, %v1492
        %v1498 = vmul.f32 %v1445, %v1481
        %v1499 = vmul.f32 %v1446, %v1481
        %v1500 = vmul.f32 %v1447, %v1485
        %v1501 = vmul.f32 %v1448, %v1485
        %v1502 = vmul.f32 %v1449, %v1489
        %v1503 = vmul.f32 %v1450, %v1489
        %v1504 = vmul.f32 %v1451, %v1493
        %v1505 = vmul.f32 %v1452, %v1493
        %1506 = vst.msk [vmem:[%s318] sm:$0xff] %vm334, %v1498
        %1507 = vst.msk [vmem:[%s318 + $0x8] sm:$0xff] %vm334, %v1499
        %1508 = vst.msk [vmem:[%s318 + $0x10] sm:$0xff] %vm334, %v1500
        %1509 = vst.msk [vmem:[%s318 + $0x18] sm:$0xff] %vm334, %v1501
        %1510 = vst.msk [vmem:[%s318 + $0x20] sm:$0xff] %vm334, %v1502
        %1511 = vst.msk [vmem:[%s318 + $0x28] sm:$0xff] %vm334, %v1503
        %1512 = vst.msk [vmem:[%s318 + $0x30] sm:$0xff] %vm334, %v1504
        %1513 = vst.msk [vmem:[%s318 + $0x38] sm:$0xff] %vm334, %v1505
        %v1514 = vld [vmem:[%s286] sm:$0xff]
        %v1515 = vld [vmem:[%s286 + $0x8] sm:$0xff]
        %v1516 = vld [vmem:[%s286 + $0x10] sm:$0xff]
        %v1517 = vld [vmem:[%s286 + $0x18] sm:$0xff]
        %v1518 = vld [vmem:[%s286 + $0x20] sm:$0xff]
        %v1519 = vld [vmem:[%s286 + $0x28] sm:$0xff]
        %v1520 = vld [vmem:[%s286 + $0x30] sm:$0xff]
        %v1521 = vld [vmem:[%s286 + $0x38] sm:$0xff]
        %v1522 = vlaneseq
        %v1523 = vshrl.u32 %v1522, 7
        %v1524 = vsub.s32 0, %v1523
        %v1525 = vrot.slane %v1420, %v1524
        %1527 = vbcast.lane.b32.xlu0 %v1525, 256
        %v1528 = vpop.permute.xlu0 %1527
        %s1530 = sor.u32 256, 8
        %1531 = vbcast.lane.b32.xlu0 %v1525, %s1530
        %v1532 = vpop.permute.xlu0 %1531
        %v1533 = vlaneseq
        %v1534 = vshrl.u32 %v1533, 7
        %v1535 = vsub.s32 1, %v1534
        %v1536 = vrot.slane %v1420, %v1535
        %1538 = vbcast.lane.b32.xlu0 %v1536, 256
        %v1539 = vpop.permute.xlu0 %1538
        %s1541 = sor.u32 256, 8
        %1542 = vbcast.lane.b32.xlu0 %v1536, %s1541
        %v1543 = vpop.permute.xlu0 %1542
        %v1544 = vlaneseq
        %v1545 = vshrl.u32 %v1544, 7
        %v1546 = vsub.s32 2, %v1545
        %v1547 = vrot.slane %v1420, %v1546
        %1549 = vbcast.lane.b32.xlu0 %v1547, 256
        %v1550 = vpop.permute.xlu0 %1549
        %s1552 = sor.u32 256, 8
        %1553 = vbcast.lane.b32.xlu0 %v1547, %s1552
        %v1554 = vpop.permute.xlu0 %1553
        %v1555 = vlaneseq
        %v1556 = vshrl.u32 %v1555, 7
        %v1557 = vsub.s32 3, %v1556
        %v1558 = vrot.slane %v1420, %v1557
        %1560 = vbcast.lane.b32.xlu0 %v1558, 256
        %v1561 = vpop.permute.xlu0 %1560
        %s1563 = sor.u32 256, 8
        %1564 = vbcast.lane.b32.xlu0 %v1558, %s1563
        %v1565 = vpop.permute.xlu0 %1564
        %v1566 = vmul.f32 %v1514, %v1528
        %v1567 = vmul.f32 %v1515, %v1532
        %v1568 = vmul.f32 %v1516, %v1539
        %v1569 = vmul.f32 %v1517, %v1543
        %v1570 = vmul.f32 %v1518, %v1550
        %v1571 = vmul.f32 %v1519, %v1554
        %v1572 = vmul.f32 %v1520, %v1561
        %v1573 = vmul.f32 %v1521, %v1565
        %1574 = vst.msk [vmem:[%s325] sm:$0xff] %vm334, %v1566
        %1575 = vst.msk [vmem:[%s325 + $0x8] sm:$0xff] %vm334, %v1567
        %1576 = vst.msk [vmem:[%s325 + $0x10] sm:$0xff] %vm334, %v1568
        %1577 = vst.msk [vmem:[%s325 + $0x18] sm:$0xff] %vm334, %v1569
        %1578 = vst.msk [vmem:[%s325 + $0x20] sm:$0xff] %vm334, %v1570
        %1579 = vst.msk [vmem:[%s325 + $0x28] sm:$0xff] %vm334, %v1571
        %1580 = vst.msk [vmem:[%s325 + $0x30] sm:$0xff] %vm334, %v1572
        %1581 = vst.msk [vmem:[%s325 + $0x38] sm:$0xff] %vm334, %v1573
        %s1582 = sand.u32 %s127, 1
        %s1583 = scalar_lea.sflag [#allocation7], %s1582
        %s1584 = sand.u32 %s127, 1
        %s1585 = smul.addr %s1584, 64
        %s1586 = scalar_lea.vmem [#allocation14], %s1585
        %s1587 = sand.u32 %s30, 1
        %s1588 = scalar_lea.sflag [#allocation16], %s1587
        %s1589 = sand.u32 %s153, 1
        %s1590 = smul.addr %s1589, 64
        %s1591 = scalar_lea.vmem [#allocation15], %s1590
        %s1592 = sand.u32 %s30, 1
        %s1593 = scalar_lea.sflag [#allocation16], %s1592
        %s1594 = sand.u32 %s179, 1
        %s1595 = smul.addr %s1594, 64
        %s1596 = scalar_lea.vmem [#allocation17], %s1595
        // Predicated region
        $region53: #{tpu_custom_call.1} parent=35 // pred_check
          %p1597 = pneg %p137
        $region54: #{tpu_custom_call.1} parent=35 // pred_check_branch
          %1599 = sbr.rel (%p1597) target = $region56
        $region55: #{tpu_custom_call.1} parent=35 // pred_region
          %s1601 = ssub.s32 1024, 1024
          %1602 = vsyncadd %s1583, %s1601
          %s1603 = smul.addr %s30, 8
          %s1604 = smul.addr %s1603, 128
          %s1605 = scalar_lea.hbm %s4, %s1604
          %s1606 = sshll.u32 %s1586, 4
          %s1607 = int_to_ptr.vmem [resolvable:$true] %s1606
          %1612 = dma.vmem_to_hbm [thread:$0]  %s1607, 1024, %s1605, %s1583, 128, 128, 8
        $region56: #{tpu_custom_call.1} parent=35 // pred_fallthru
          _
        // Predicated region
        $region57: #{tpu_custom_call.1} parent=35 // pred_check
          %p1613 = pneg %p163
        $region58: #{tpu_custom_call.1} parent=35 // pred_check_branch
          %1615 = sbr.rel (%p1613) target = $region60
        $region59: #{tpu_custom_call.1} parent=35 // pred_region
          %s1617 = ssub.s32 1024, 1024
          %1618 = vsyncadd %s1588, %s1617
          %s1619 = smul.addr %s30, 8
          %s1620 = smul.addr %s1619, 128
          %s1621 = scalar_lea.hbm %s5, %s1620
          %s1622 = sshll.u32 %s1591, 4
          %s1623 = int_to_ptr.vmem [resolvable:$true] %s1622
          %1628 = dma.vmem_to_hbm [thread:$0]  %s1623, 1024, %s1621, %s1588, 128, 128, 8
        $region60: #{tpu_custom_call.1} parent=35 // pred_fallthru
          _
        // Predicated region
        $region61: #{tpu_custom_call.1} parent=35 // pred_check
          %p1629 = pneg %p189
        $region62: #{tpu_custom_call.1} parent=35 // pred_check_branch
          %1631 = sbr.rel (%p1629) target = $region64
        $region63: #{tpu_custom_call.1} parent=35 // pred_region
          %s1633 = ssub.s32 1024, 1024
          %1634 = vsyncadd %s1593, %s1633
          %s1635 = smul.addr %s30, 8
          %s1636 = smul.addr %s1635, 128
          %s1637 = scalar_lea.hbm %s6, %s1636
          %s1638 = sshll.u32 %s1596, 4
          %s1639 = int_to_ptr.vmem [resolvable:$true] %s1638
          %1644 = dma.vmem_to_hbm [thread:$0]  %s1639, 1024, %s1637, %s1593, 128, 128, 8
        $region64: #{tpu_custom_call.1} parent=35 // pred_fallthru
          _
      $region36: #{tpu_custom_call.1} parent=5 // pred_fallthru
        _
      %p1645 = scmp.le.s32.totalorder 2, %s25
      // Predicated region
      $region65: #{tpu_custom_call.1} parent=5 // pred_check
        %p1646 = pneg %p1645
      $region66: #{tpu_custom_call.1} parent=5 // pred_check_branch
        %1648 = sbr.rel (%p1646) target = $region68
      $region67: #{tpu_custom_call.1} parent=5 // pred_region
        %s1649 = ssub.s32 %s25, 2
        // Predicated region
        $region69: #{tpu_custom_call.1} parent=67 // pred_check
          %p1650 = pneg %p143
        $region70: #{tpu_custom_call.1} parent=67 // pred_check_branch
          %1652 = sbr.rel (%p1650) target = $region72
        $region71: #{tpu_custom_call.1} parent=67 // pred_region
          %s1653 = sand.u32 %s128, 1
          %s1654 = scalar_lea.sflag [#allocation7], %s1653
          %s1655 = sand.u32 %s128, 1
          %s1656 = smul.addr %s1655, 64
          %s1657 = scalar_lea.vmem [#allocation14], %s1656
          %1658 = dma.done %s1654, 1024
        $region72: #{tpu_custom_call.1} parent=67 // pred_fallthru
          _
        // Predicated region
        $region73: #{tpu_custom_call.1} parent=67 // pred_check
          %p1659 = pneg %p169
        $region74: #{tpu_custom_call.1} parent=67 // pred_check_branch
          %1661 = sbr.rel (%p1659) target = $region76
        $region75: #{tpu_custom_call.1} parent=67 // pred_region
          %s1662 = sand.u32 %s31, 1
          %s1663 = scalar_lea.sflag [#allocation16], %s1662
          %s1664 = sand.u32 %s154, 1
          %s1665 = smul.addr %s1664, 64
          %s1666 = scalar_lea.vmem [#allocation15], %s1665
          %1667 = dma.done %s1663, 1024
        $region76: #{tpu_custom_call.1} parent=67 // pred_fallthru
          _
        // Predicated region
        $region77: #{tpu_custom_call.1} parent=67 // pred_check
          %p1668 = pneg %p195
        $region78: #{tpu_custom_call.1} parent=67 // pred_check_branch
          %1670 = sbr.rel (%p1668) target = $region80
        $region79: #{tpu_custom_call.1} parent=67 // pred_region
          %s1671 = sand.u32 %s31, 1
          %s1672 = scalar_lea.sflag [#allocation16], %s1671
          %s1673 = sand.u32 %s180, 1
          %s1674 = smul.addr %s1673, 64
          %s1675 = scalar_lea.vmem [#allocation17], %s1674
          %1676 = dma.done %s1672, 1024
        $region80: #{tpu_custom_call.1} parent=67 // pred_fallthru
          _
      $region68: #{tpu_custom_call.1} parent=5 // pred_fallthru
        _
    $region6: #{tpu_custom_call.1} parent=1 // loop_footer
      %s29 = sadd.s32 1, %s25
    $region7: #{tpu_custom_call.1} parent=1 // loop_footer_branch
      %24 = sbr.rel target = $region3
    $region8: #{tpu_custom_call.1} parent=1 // loop_exit
      _
    %1677 = vsyncpa [#allocation6], 1
    %s1678 = scalar_lea.sflag [#allocation6], 1
    %1679 = vsyncpa %s1678, 1
    %1680 = vsyncpa [#allocation7], 1
    %s1681 = scalar_lea.sflag [#allocation7], 1
    %1682 = vsyncpa %s1681, 1
    %1683 = vsyncpa [#allocation16], 1
    %s1684 = scalar_lea.sflag [#allocation16], 1
    %1685 = vsyncpa %s1684, 1
    %1686 = vsyncpa [#allocation8], 1
    %s1687 = scalar_lea.sflag [#allocation8], 1
    %1688 = vsyncpa %s1687, 1
    %1689 = vsyncpa [#allocation9], 1
    %s1690 = scalar_lea.sflag [#allocation9], 1
    %1691 = vsyncpa %s1690, 1
    %1692 = vsyncpa [#allocation12], 1

</llo_original>
